<compile_context>
chip_gen: v7x
topology: tpu7x:2x2x1
jax: 0.10.0
libtpu: 0.0.40
codegen_flags: <defaults>
</compile_context>

<pallas_src>
import functools

import jax
import jax.numpy as jnp
from jax.experimental import pallas as pl
from jax.experimental.pallas import tpu as pltpu


def _encoder_kernel(x_ref, wih_ref, whh_ref, b_ref,
                    hN_ref, cN_ref,
                    seq_scr, xproj_scr, h_scr, c_scr,
                    *, seq_len, batch_pad, hidden, feat):
    """One grid step == one full LSTM layer (time loop runs inside the kernel).

    seq_scr holds the current layer's input sequence, time-major and flattened to
    (T*Bp, feat); the time loop overwrites it in place with this layer's hidden
    states so the next layer (next grid step) consumes it straight from VMEM.
    NOTE: this carry requires the layer grid axis to stay sequential ("arbitrary")
    on a single core -- do not mark it parallel / core-shard it.
    """
    T, Bp, H, F = seq_len, batch_pad, hidden, feat
    layer = pl.program_id(0)

    # Layer-0 input.  Padded batch rows and padded feature columns are zero from the
    # wrapper, so seq_scr's padded lanes [H, F) start (and stay) zero: the time loop
    # below only ever writes lanes [0, H).
    @pl.when(layer == 0)
    def _():
        seq_scr[...] = x_ref[...]

    # Hoisted input projection: one MXU matmul covering ALL timesteps.
    #   (T*Bp, F) @ (F, 4H) + bias
    xproj_scr[...] = (
        jnp.dot(seq_scr[...], wih_ref[0], preferred_element_type=jnp.float32)
        + b_ref[0])

    # h0 = c0 = 0, as in Encoder.forward.
    h_scr[...] = jnp.zeros_like(h_scr)
    c_scr[...] = jnp.zeros_like(c_scr)

    # Loop-invariant recurrent weight: load once, reuse in every unrolled step.
    whh = whh_ref[0]
    # TODO(synk): stage whh in the MXU weight registers (pltpu.matmul_push_rhs /
    # matmul_acc_lhs / matmul_pop) once a portable recipe across MRF (v5e/v6e) and
    # MRB (v7x) result paths is validated; jnp.dot kept here for robustness.

    def step(t, carry):
        # Sublane-aligned slice start (Bp is a multiple of 8).
        start = pl.multiple_of(t * Bp, Bp)
        h_prev = h_scr[...]
        c_prev = c_scr[...]
        # The only matmul on the serial critical path: (Bp, H) @ (H, 4H).
        gates = xproj_scr[pl.ds(start, Bp), :] + jnp.dot(
            h_prev, whh, preferred_element_type=jnp.float32)
        # Kernel gate order is [i, f, o, g]: one sigmoid over the contiguous 0:3H
        # slab, one tanh over 3H:4H.  At H=32, 4H=128 so gates fill one vreg; the
        # H-wide sub-slices below are cheap lane extracts (stays correct, just
        # slower, for other H).
        sig = jax.nn.sigmoid(gates[:, 0:3 * H])
        g_g = jnp.tanh(gates[:, 3 * H:4 * H])
        i_g = sig[:, 0 * H:1 * H]
        f_g = sig[:, 1 * H:2 * H]
        o_g = sig[:, 2 * H:3 * H]
        c_new = f_g * c_prev + i_g * g_g
        h_new = o_g * jnp.tanh(c_new)
        h_scr[...] = h_new
        c_scr[...] = c_new
        # Stash this step's hidden state as the next layer's input (stays in VMEM).
        if F == H:
            seq_scr[pl.ds(start, Bp), :] = h_new
        else:
            # Padded lanes [H, F) remain zero (zeroed via the layer-0 input pad);
            # no per-step zeros/concat.
            seq_scr[pl.ds(start, Bp), pl.ds(0, H)] = h_new
        return carry

    # Full unroll for short sequences; bounded unroll for long ones to avoid vreg
    # pressure / spills on the serial chain.
    jax.lax.fori_loop(0, T, step, 0, unroll=(T if T <= 32 else 8))

    hN_ref[0] = h_scr[...].astype(hN_ref.dtype)
    cN_ref[0] = c_scr[...].astype(cN_ref.dtype)


def encoder_forward(x, params, hidden_size):
    """x: (B, T, input_size) batch_first, like the PyTorch Encoder.
    Returns (hidden_state, cell_state), each (num_layers, B, hidden_size)."""
    B, T, F_in = x.shape
    H = hidden_size
    L = len(params)
    F = max(F_in, H)                 # common input width for all layers
    Bp = ((B + 7) // 8) * 8          # batch padded to full sublanes

    # Time-major, batch padded to Bp (zero rows), features padded to F (zero cols),
    # flattened to (T*Bp, F).
    x_tm = jnp.transpose(x, (1, 0, 2)).astype(jnp.float32)          # (T, B, F_in)
    x_tm = jnp.pad(x_tm, ((0, 0), (0, Bp - B), (0, F - F_in)))
    x_tm = x_tm.reshape(T * Bp, F)

    # Reorder gate columns from PyTorch [i, f, g, o] to kernel order [i, f, o, g].
    def perm(w):
        return jnp.concatenate(
            [w[..., 0:2 * H], w[..., 3 * H:4 * H], w[..., 2 * H:3 * H]], axis=-1)

    # Stack per-layer weights; zero-pad W_ih^T rows to the common width F (the
    # matching padded input columns are zero, so the math is unchanged).
    wih_all = jnp.stack([
        perm(jnp.pad(p["w_ih_t"], ((0, F - p["w_ih_t"].shape[0]), (0, 0))))
        for p in params])                                    # (L, F, 4H)
    whh_all = jnp.stack([perm(p["w_hh_t"]) for p in params])  # (L, H, 4H)
    bias_all = jnp.stack([perm(p["bias"]) for p in params])   # (L, 1, 4H)

    kernel = functools.partial(_encoder_kernel, seq_len=T, batch_pad=Bp,
                               hidden=H, feat=F)

    # Explicit VMEM budget (v5e default scoped limit is only 16 MiB): scratch +
    # input/weight/output blocks with 2x headroom, capped for v7x's 64 MiB VMEM.
    scratch_bytes = 4 * (T * Bp * F + T * Bp * 4 * H + 2 * Bp * H)
    io_bytes = 4 * (T * Bp * F + F * 4 * H + H * 4 * H + 4 * H + 2 * Bp * H)
    vmem_limit = int(min(64 * 1024 * 1024,
                         max(16 * 1024 * 1024,
                             2 * (scratch_bytes + 2 * io_bytes))))
    # TODO(synk): for production T/B the hoisted projection should be time-chunked
    # (emit_pipeline over T-chunks) to fit v7x's 64 MiB VMEM; not needed at these sizes.

    hN, cN = pl.pallas_call(
        kernel,
        out_shape=(
            jax.ShapeDtypeStruct((L, Bp, H), jnp.float32),   # final h per layer (padded B)
            jax.ShapeDtypeStruct((L, Bp, H), jnp.float32),   # final c per layer (padded B)
        ),
        grid_spec=pltpu.PrefetchScalarGridSpec(
            num_scalar_prefetch=0,
            grid=(L,),                                       # one grid step per layer
            in_specs=[
                pl.BlockSpec((T * Bp, F), lambda l: (0, 0)),          # x (used at layer 0)
                pl.BlockSpec((1, F, 4 * H), lambda l: (l, 0, 0)),     # W_ih^T
                pl.BlockSpec((1, H, 4 * H), lambda l: (l, 0, 0)),     # W_hh^T
                pl.BlockSpec((1, 1, 4 * H), lambda l: (l, 0, 0)),     # combined bias
            ],
            out_specs=[
                pl.BlockSpec((1, Bp, H), lambda l: (l, 0, 0)),
                pl.BlockSpec((1, Bp, H), lambda l: (l, 0, 0)),
            ],
            scratch_shapes=[
                pltpu.VMEM((T * Bp, F), jnp.float32),        # current layer's input seq
                pltpu.VMEM((T * Bp, 4 * H), jnp.float32),    # hoisted input projection
                pltpu.VMEM((Bp, H), jnp.float32),            # h state
                pltpu.VMEM((Bp, H), jnp.float32),            # c state
            ],
        ),
        compiler_params=pltpu.CompilerParams(
            # Layers MUST stay sequential: seq_scr carries layer l -> l+1.
            dimension_semantics=("arbitrary",),
            vmem_limit_bytes=vmem_limit,
        ),
    )(x_tm, wih_all, whh_all, bias_all)

    # Drop padded batch rows.
    return hN[:, :B, :], cN[:, :B, :]


def init_encoder_params(key, input_size, hidden_size, num_layers):
    """Deterministic init matching nn.LSTM parameter shapes (uniform +-1/sqrt(H)).
    Returned in PyTorch gate order [i, f, g, o]; the wrapper permutes for the kernel."""
    params = []
    bound = 1.0 / (hidden_size ** 0.5)
    for layer in range(num_layers):
        in_sz = input_size if layer == 0 else hidden_size
        key, k1, k2, k3, k4 = jax.random.split(key, 5)
        w_ih = jax.random.uniform(k1, (4 * hidden_size, in_sz), jnp.float32, -bound, bound)
        w_hh = jax.random.uniform(k2, (4 * hidden_size, hidden_size), jnp.float32, -bound, bound)
        b_ih = jax.random.uniform(k3, (4 * hidden_size,), jnp.float32, -bound, bound)
        b_hh = jax.random.uniform(k4, (4 * hidden_size,), jnp.float32, -bound, bound)
        params.append({
            "w_ih_t": w_ih.T,                               # (in_sz, 4H)
            "w_hh_t": w_hh.T,                               # (H, 4H)
            "bias": (b_ih + b_hh)[None, :],                 # (1, 4H)
        })
    return params


def _reference_forward(x, params, hidden_size):
    """Pure-JAX reference for the same LSTM math (PyTorch gate order)."""
    B, T, _ = x.shape
    x_tm = jnp.transpose(x, (1, 0, 2)).astype(jnp.float32)
    h_fin, c_fin = [], []
    for p in params:
        H = hidden_size
        h = jnp.zeros((B, H), jnp.float32)
        c = jnp.zeros((B, H), jnp.float32)
        outs = []
        for t in range(T):
            gates = x_tm[t] @ p["w_ih_t"] + h @ p["w_hh_t"] + p["bias"]
            i = jax.nn.sigmoid(gates[:, 0 * H:1 * H])
            f = jax.nn.sigmoid(gates[:, 1 * H:2 * H])
            g = jnp.tanh(gates[:, 2 * H:3 * H])
            o = jax.nn.sigmoid(gates[:, 3 * H:4 * H])
            c = f * c + i * g
            h = o * jnp.tanh(c)
            outs.append(h)
        x_tm = jnp.stack(outs, axis=0)
        h_fin.append(h)
        c_fin.append(c)
    return jnp.stack(h_fin, 0), jnp.stack(c_fin, 0)


if __name__ == "__main__":
    # Small shapes consistent with the module: batch=2, seq=8, input=16, hidden=32, layers=2.
    batch, seq_len, input_size, hidden_size, num_layers = 2, 8, 16, 32, 2

    key = jax.random.PRNGKey(0)
    key, xk = jax.random.split(key)
    x = jax.random.normal(xk, (batch, seq_len, input_size), jnp.float32)

    params = init_encoder_params(key, input_size, hidden_size, num_layers)

    hidden_state, cell_state = encoder_forward(x, params, hidden_size)
    jax.block_until_ready((hidden_state, cell_state))

    # Sanity check against pure-JAX reference.
    h_ref, c_ref = _reference_forward(x, params, hidden_size)
    assert hidden_state.shape == (num_layers, batch, hidden_size)
    assert cell_state.shape == (num_layers, batch, hidden_size)
    assert jnp.allclose(hidden_state, h_ref, atol=1e-5, rtol=1e-5)
    assert jnp.allclose(cell_state, c_ref, atol=1e-5, rtol=1e-5)

    print("KERNEL_OK")
</pallas_src>

<mosaic_0001>
module attributes {stable_mosaic.version = 11 : i64} {
  func.func @_encoder_kernel(%arg0: i32, %arg1: memref<64x32xf32, #tpu.memory_space<vmem>>, %arg2: memref<1x32x128xf32, #tpu.memory_space<vmem>>, %arg3: memref<1x32x128xf32, #tpu.memory_space<vmem>>, %arg4: memref<1x1x128xf32, #tpu.memory_space<vmem>>, %arg5: memref<1x8x32xf32, #tpu.memory_space<vmem>>, %arg6: memref<1x8x32xf32, #tpu.memory_space<vmem>>, %arg7: memref<64x32xf32, #tpu.memory_space<vmem>>, %arg8: memref<64x128xf32, #tpu.memory_space<vmem>>, %arg9: memref<8x32xf32, #tpu.memory_space<vmem>>, %arg10: memref<8x32xf32, #tpu.memory_space<vmem>>) attributes {dimension_semantics = [#tpu.dimension_semantics<arbitrary>], iteration_bounds = array<i64: 2>, scalar_prefetch = 0 : i64, scratch_operands = 4 : i64, tpu.core_type = #tpu.core_type<tc>, window_params = [{pipeline_mode = #tpu.pipeline_mode<synchronous>, transform_indices = @transform_0, window_bounds = array<i64: 64, 32>}, {transform_indices = @transform_1, window_bounds = array<i64: 1, 32, 128>}, {transform_indices = @transform_2, window_bounds = array<i64: 1, 32, 128>}, {transform_indices = @transform_3, window_bounds = array<i64: 1, 1, 128>}, {transform_indices = @transform_4, window_bounds = array<i64: 1, 8, 32>}, {transform_indices = @transform_5, window_bounds = array<i64: 1, 8, 32>}]} {
    %c0_i32 = arith.constant 0 : i32
    %0 = arith.cmpi eq, %arg0, %c0_i32 : i32
    %1 = arith.extui %0 : i1 to i32
    %c0_i32_0 = arith.constant 0 : i32
    %2 = arith.cmpi ne, %1, %c0_i32_0 : i32
    scf.if %2 {
      %c0_134 = arith.constant 0 : index
      %c0_135 = arith.constant 0 : index
      %250 = vector.load %arg1[%c0_134, %c0_135] : memref<64x32xf32, #tpu.memory_space<vmem>>, vector<64x32xf32>
      %c0_136 = arith.constant 0 : index
      %c0_137 = arith.constant 0 : index
      %251 = vector.load %arg7[%c0_136, %c0_137] : memref<64x32xf32, #tpu.memory_space<vmem>>, vector<64x32xf32>
      tpu.vector_store %arg7[%c0_136, %c0_137], %250 {strides = array<i32>} : memref<64x32xf32, #tpu.memory_space<vmem>>, vector<64x32xf32>,
    } else {
    }
    %c0 = arith.constant 0 : index
    %c0_1 = arith.constant 0 : index
    %3 = vector.load %arg7[%c0, %c0_1] : memref<64x32xf32, #tpu.memory_space<vmem>>, vector<64x32xf32>
    %c0_2 = arith.constant 0 : index
    %c0_3 = arith.constant 0 : index
    %c0_4 = arith.constant 0 : index
    %4 = vector.load %arg2[%c0_2, %c0_3, %c0_4] : memref<1x32x128xf32, #tpu.memory_space<vmem>>, vector<1x32x128xf32>
    %5 = vector.shape_cast %4 : vector<1x32x128xf32> to vector<32x128xf32>
    %cst = arith.constant dense<0.000000e+00> : vector<64x128xf32>
    %6 = tpu.matmul %3, %5, %cst {dimension_numbers = #tpu.dot_dimension_numbers<[1], [0], [0], [1], [0, 0, 1, 1], [], []>} : vector<64x32xf32>, vector<32x128xf32>, vector<64x128xf32> -> vector<64x128xf32>
    %c0_5 = arith.constant 0 : index
    %c0_6 = arith.constant 0 : index
    %c0_7 = arith.constant 0 : index
    %7 = vector.load %arg4[%c0_5, %c0_6, %c0_7] : memref<1x1x128xf32, #tpu.memory_space<vmem>>, vector<1x1x128xf32>
    %8 = vector.shape_cast %7 : vector<1x1x128xf32> to vector<1x128xf32>
    %9 = vector.broadcast %8 : vector<1x128xf32> to vector<64x128xf32>
    %10 = arith.addf %6, %9 : vector<64x128xf32>
    %c0_8 = arith.constant 0 : index
    %c0_9 = arith.constant 0 : index
    %11 = vector.load %arg8[%c0_8, %c0_9] : memref<64x128xf32, #tpu.memory_space<vmem>>, vector<64x128xf32>
    tpu.vector_store %arg8[%c0_8, %c0_9], %10 {strides = array<i32>} : memref<64x128xf32, #tpu.memory_space<vmem>>, vector<64x128xf32>,
    %cst_10 = arith.constant 0.000000e+00 : f32
    %12 = vector.broadcast %cst_10 : f32 to vector<8x32xf32>
    %c0_11 = arith.constant 0 : index
    %c0_12 = arith.constant 0 : index
    %13 = vector.load %arg9[%c0_11, %c0_12] : memref<8x32xf32, #tpu.memory_space<vmem>>, vector<8x32xf32>
    tpu.vector_store %arg9[%c0_11, %c0_12], %12 {strides = array<i32>} : memref<8x32xf32, #tpu.memory_space<vmem>>, vector<8x32xf32>,
    %cst_13 = arith.constant 0.000000e+00 : f32
    %14 = vector.broadcast %cst_13 : f32 to vector<8x32xf32>
    %c0_14 = arith.constant 0 : index
    %c0_15 = arith.constant 0 : index
    %15 = vector.load %arg10[%c0_14, %c0_15] : memref<8x32xf32, #tpu.memory_space<vmem>>, vector<8x32xf32>
    tpu.vector_store %arg10[%c0_14, %c0_15], %14 {strides = array<i32>} : memref<8x32xf32, #tpu.memory_space<vmem>>, vector<8x32xf32>,
    %c0_16 = arith.constant 0 : index
    %c0_17 = arith.constant 0 : index
    %c0_18 = arith.constant 0 : index
    %16 = vector.load %arg3[%c0_16, %c0_17, %c0_18] : memref<1x32x128xf32, #tpu.memory_space<vmem>>, vector<1x32x128xf32>
    %17 = vector.shape_cast %16 : vector<1x32x128xf32> to vector<32x128xf32>
    %c0_i32_19 = arith.constant 0 : i32
    %c8_i32 = arith.constant 8 : i32
    %18 = arith.muli %c0_i32_19, %c8_i32 : i32
    %19 = tpu.assume_multiple %18, 8 : i32
    %c0_20 = arith.constant 0 : index
    %c0_21 = arith.constant 0 : index
    %20 = vector.load %arg9[%c0_20, %c0_21] : memref<8x32xf32, #tpu.memory_space<vmem>>, vector<8x32xf32>
    %c0_22 = arith.constant 0 : index
    %c0_23 = arith.constant 0 : index
    %21 = vector.load %arg10[%c0_22, %c0_23] : memref<8x32xf32, #tpu.memory_space<vmem>>, vector<8x32xf32>
    %22 = arith.index_cast %19 : i32 to index
    %c0_24 = arith.constant 0 : index
    %23 = vector.load %arg8[%22, %c0_24] : memref<64x128xf32, #tpu.memory_space<vmem>>, vector<8x128xf32>
    %cst_25 = arith.constant dense<0.000000e+00> : vector<8x128xf32>
    %24 = tpu.matmul %20, %17, %cst_25 {dimension_numbers = #tpu.dot_dimension_numbers<[1], [0], [0], [1], [0, 0, 1, 1], [], []>} : vector<8x32xf32>, vector<32x128xf32>, vector<8x128xf32> -> vector<8x128xf32>
    %25 = arith.addf %23, %24 : vector<8x128xf32>
    %26 = vector.extract_strided_slice %25 {offsets = [0, 0], sizes = [8, 96], strides = [1, 1]} : vector<8x128xf32> to vector<8x96xf32>
    %27 = arith.negf %26 : vector<8x96xf32>
    %28 = math.exp %27 : vector<8x96xf32>
    %cst_26 = arith.constant 1.000000e+00 : f32
    %29 = vector.broadcast %cst_26 : f32 to vector<8x96xf32>
    %30 = arith.addf %29, %28 : vector<8x96xf32>
    %31 = arith.divf %29, %30 : vector<8x96xf32>
    %32 = vector.extract_strided_slice %25 {offsets = [0, 96], sizes = [8, 32], strides = [1, 1]} : vector<8x128xf32> to vector<8x32xf32>
    %33 = math.tanh %32 : vector<8x32xf32>
    %34 = vector.extract_strided_slice %31 {offsets = [0, 0], sizes = [8, 32], strides = [1, 1]} : vector<8x96xf32> to vector<8x32xf32>
    %35 = vector.extract_strided_slice %31 {offsets = [0, 32], sizes = [8, 32], strides = [1, 1]} : vector<8x96xf32> to vector<8x32xf32>
    %36 = vector.extract_strided_slice %31 {offsets = [0, 64], sizes = [8, 32], strides = [1, 1]} : vector<8x96xf32> to vector<8x32xf32>
    %37 = arith.mulf %35, %21 : vector<8x32xf32>
    %38 = arith.mulf %34, %33 : vector<8x32xf32>
    %39 = arith.addf %37, %38 : vector<8x32xf32>
    %40 = math.tanh %39 : vector<8x32xf32>
    %41 = arith.mulf %36, %40 : vector<8x32xf32>
    %c0_27 = arith.constant 0 : index
    %c0_28 = arith.constant 0 : index
    %42 = vector.load %arg9[%c0_27, %c0_28] : memref<8x32xf32, #tpu.memory_space<vmem>>, vector<8x32xf32>
    tpu.vector_store %arg9[%c0_27, %c0_28], %41 {strides = array<i32>} : memref<8x32xf32, #tpu.memory_space<vmem>>, vector<8x32xf32>,
    %c0_29 = arith.constant 0 : index
    %c0_30 = arith.constant 0 : index
    %43 = vector.load %arg10[%c0_29, %c0_30] : memref<8x32xf32, #tpu.memory_space<vmem>>, vector<8x32xf32>
    tpu.vector_store %arg10[%c0_29, %c0_30], %39 {strides = array<i32>} : memref<8x32xf32, #tpu.memory_space<vmem>>, vector<8x32xf32>,
    %44 = arith.index_cast %19 : i32 to index
    %c0_31 = arith.constant 0 : index
    %45 = vector.load %arg7[%44, %c0_31] : memref<64x32xf32, #tpu.memory_space<vmem>>, vector<8x32xf32>
    tpu.vector_store %arg7[%44, %c0_31], %41 {strides = array<i32>} : memref<64x32xf32, #tpu.memory_space<vmem>>, vector<8x32xf32>,
    %c1_i32 = arith.constant 1 : i32
    %c8_i32_32 = arith.constant 8 : i32
    %46 = arith.muli %c1_i32, %c8_i32_32 : i32
    %47 = tpu.assume_multiple %46, 8 : i32
    %c0_33 = arith.constant 0 : index
    %c0_34 = arith.constant 0 : index
    %48 = vector.load %arg9[%c0_33, %c0_34] : memref<8x32xf32, #tpu.memory_space<vmem>>, vector<8x32xf32>
    %c0_35 = arith.constant 0 : index
    %c0_36 = arith.constant 0 : index
    %49 = vector.load %arg10[%c0_35, %c0_36] : memref<8x32xf32, #tpu.memory_space<vmem>>, vector<8x32xf32>
    %50 = arith.index_cast %47 : i32 to index
    %c0_37 = arith.constant 0 : index
    %51 = vector.load %arg8[%50, %c0_37] : memref<64x128xf32, #tpu.memory_space<vmem>>, vector<8x128xf32>
    %cst_38 = arith.constant dense<0.000000e+00> : vector<8x128xf32>
    %52 = tpu.matmul %48, %17, %cst_38 {dimension_numbers = #tpu.dot_dimension_numbers<[1], [0], [0], [1], [0, 0, 1, 1], [], []>} : vector<8x32xf32>, vector<32x128xf32>, vector<8x128xf32> -> vector<8x128xf32>
    %53 = arith.addf %51, %52 : vector<8x128xf32>
    %54 = vector.extract_strided_slice %53 {offsets = [0, 0], sizes = [8, 96], strides = [1, 1]} : vector<8x128xf32> to vector<8x96xf32>
    %55 = arith.negf %54 : vector<8x96xf32>
    %56 = math.exp %55 : vector<8x96xf32>
    %cst_39 = arith.constant 1.000000e+00 : f32
    %57 = vector.broadcast %cst_39 : f32 to vector<8x96xf32>
    %58 = arith.addf %57, %56 : vector<8x96xf32>
    %59 = arith.divf %57, %58 : vector<8x96xf32>
    %60 = vector.extract_strided_slice %53 {offsets = [0, 96], sizes = [8, 32], strides = [1, 1]} : vector<8x128xf32> to vector<8x32xf32>
    %61 = math.tanh %60 : vector<8x32xf32>
    %62 = vector.extract_strided_slice %59 {offsets = [0, 0], sizes = [8, 32], strides = [1, 1]} : vector<8x96xf32> to vector<8x32xf32>
    %63 = vector.extract_strided_slice %59 {offsets = [0, 32], sizes = [8, 32], strides = [1, 1]} : vector<8x96xf32> to vector<8x32xf32>
    %64 = vector.extract_strided_slice %59 {offsets = [0, 64], sizes = [8, 32], strides = [1, 1]} : vector<8x96xf32> to vector<8x32xf32>
    %65 = arith.mulf %63, %49 : vector<8x32xf32>
    %66 = arith.mulf %62, %61 : vector<8x32xf32>
    %67 = arith.addf %65, %66 : vector<8x32xf32>
    %68 = math.tanh %67 : vector<8x32xf32>
    %69 = arith.mulf %64, %68 : vector<8x32xf32>
    %c0_40 = arith.constant 0 : index
    %c0_41 = arith.constant 0 : index
    %70 = vector.load %arg9[%c0_40, %c0_41] : memref<8x32xf32, #tpu.memory_space<vmem>>, vector<8x32xf32>
    tpu.vector_store %arg9[%c0_40, %c0_41], %69 {strides = array<i32>} : memref<8x32xf32, #tpu.memory_space<vmem>>, vector<8x32xf32>,
    %c0_42 = arith.constant 0 : index
    %c0_43 = arith.constant 0 : index
    %71 = vector.load %arg10[%c0_42, %c0_43] : memref<8x32xf32, #tpu.memory_space<vmem>>, vector<8x32xf32>
    tpu.vector_store %arg10[%c0_42, %c0_43], %67 {strides = array<i32>} : memref<8x32xf32, #tpu.memory_space<vmem>>, vector<8x32xf32>,
    %72 = arith.index_cast %47 : i32 to index
    %c0_44 = arith.constant 0 : index
    %73 = vector.load %arg7[%72, %c0_44] : memref<64x32xf32, #tpu.memory_space<vmem>>, vector<8x32xf32>
    tpu.vector_store %arg7[%72, %c0_44], %69 {strides = array<i32>} : memref<64x32xf32, #tpu.memory_space<vmem>>, vector<8x32xf32>,
    %c2_i32 = arith.constant 2 : i32
    %c8_i32_45 = arith.constant 8 : i32
    %74 = arith.muli %c2_i32, %c8_i32_45 : i32
    %75 = tpu.assume_multiple %74, 8 : i32
    %c0_46 = arith.constant 0 : index
    %c0_47 = arith.constant 0 : index
    %76 = vector.load %arg9[%c0_46, %c0_47] : memref<8x32xf32, #tpu.memory_space<vmem>>, vector<8x32xf32>
    %c0_48 = arith.constant 0 : index
    %c0_49 = arith.constant 0 : index
    %77 = vector.load %arg10[%c0_48, %c0_49] : memref<8x32xf32, #tpu.memory_space<vmem>>, vector<8x32xf32>
    %78 = arith.index_cast %75 : i32 to index
    %c0_50 = arith.constant 0 : index
    %79 = vector.load %arg8[%78, %c0_50] : memref<64x128xf32, #tpu.memory_space<vmem>>, vector<8x128xf32>
    %cst_51 = arith.constant dense<0.000000e+00> : vector<8x128xf32>
    %80 = tpu.matmul %76, %17, %cst_51 {dimension_numbers = #tpu.dot_dimension_numbers<[1], [0], [0], [1], [0, 0, 1, 1], [], []>} : vector<8x32xf32>, vector<32x128xf32>, vector<8x128xf32> -> vector<8x128xf32>
    %81 = arith.addf %79, %80 : vector<8x128xf32>
    %82 = vector.extract_strided_slice %81 {offsets = [0, 0], sizes = [8, 96], strides = [1, 1]} : vector<8x128xf32> to vector<8x96xf32>
    %83 = arith.negf %82 : vector<8x96xf32>
    %84 = math.exp %83 : vector<8x96xf32>
    %cst_52 = arith.constant 1.000000e+00 : f32
    %85 = vector.broadcast %cst_52 : f32 to vector<8x96xf32>
    %86 = arith.addf %85, %84 : vector<8x96xf32>
    %87 = arith.divf %85, %86 : vector<8x96xf32>
    %88 = vector.extract_strided_slice %81 {offsets = [0, 96], sizes = [8, 32], strides = [1, 1]} : vector<8x128xf32> to vector<8x32xf32>
    %89 = math.tanh %88 : vector<8x32xf32>
    %90 = vector.extract_strided_slice %87 {offsets = [0, 0], sizes = [8, 32], strides = [1, 1]} : vector<8x96xf32> to vector<8x32xf32>
    %91 = vector.extract_strided_slice %87 {offsets = [0, 32], sizes = [8, 32], strides = [1, 1]} : vector<8x96xf32> to vector<8x32xf32>
    %92 = vector.extract_strided_slice %87 {offsets = [0, 64], sizes = [8, 32], strides = [1, 1]} : vector<8x96xf32> to vector<8x32xf32>
    %93 = arith.mulf %91, %77 : vector<8x32xf32>
    %94 = arith.mulf %90, %89 : vector<8x32xf32>
    %95 = arith.addf %93, %94 : vector<8x32xf32>
    %96 = math.tanh %95 : vector<8x32xf32>
    %97 = arith.mulf %92, %96 : vector<8x32xf32>
    %c0_53 = arith.constant 0 : index
    %c0_54 = arith.constant 0 : index
    %98 = vector.load %arg9[%c0_53, %c0_54] : memref<8x32xf32, #tpu.memory_space<vmem>>, vector<8x32xf32>
    tpu.vector_store %arg9[%c0_53, %c0_54], %97 {strides = array<i32>} : memref<8x32xf32, #tpu.memory_space<vmem>>, vector<8x32xf32>,
    %c0_55 = arith.constant 0 : index
    %c0_56 = arith.constant 0 : index
    %99 = vector.load %arg10[%c0_55, %c0_56] : memref<8x32xf32, #tpu.memory_space<vmem>>, vector<8x32xf32>
    tpu.vector_store %arg10[%c0_55, %c0_56], %95 {strides = array<i32>} : memref<8x32xf32, #tpu.memory_space<vmem>>, vector<8x32xf32>,
    %100 = arith.index_cast %75 : i32 to index
    %c0_57 = arith.constant 0 : index
    %101 = vector.load %arg7[%100, %c0_57] : memref<64x32xf32, #tpu.memory_space<vmem>>, vector<8x32xf32>
    tpu.vector_store %arg7[%100, %c0_57], %97 {strides = array<i32>} : memref<64x32xf32, #tpu.memory_space<vmem>>, vector<8x32xf32>,
    %c3_i32 = arith.constant 3 : i32
    %c8_i32_58 = arith.constant 8 : i32
    %102 = arith.muli %c3_i32, %c8_i32_58 : i32
    %103 = tpu.assume_multiple %102, 8 : i32
    %c0_59 = arith.constant 0 : index
    %c0_60 = arith.constant 0 : index
    %104 = vector.load %arg9[%c0_59, %c0_60] : memref<8x32xf32, #tpu.memory_space<vmem>>, vector<8x32xf32>
    %c0_61 = arith.constant 0 : index
    %c0_62 = arith.constant 0 : index
    %105 = vector.load %arg10[%c0_61, %c0_62] : memref<8x32xf32, #tpu.memory_space<vmem>>, vector<8x32xf32>
    %106 = arith.index_cast %103 : i32 to index
    %c0_63 = arith.constant 0 : index
    %107 = vector.load %arg8[%106, %c0_63] : memref<64x128xf32, #tpu.memory_space<vmem>>, vector<8x128xf32>
    %cst_64 = arith.constant dense<0.000000e+00> : vector<8x128xf32>
    %108 = tpu.matmul %104, %17, %cst_64 {dimension_numbers = #tpu.dot_dimension_numbers<[1], [0], [0], [1], [0, 0, 1, 1], [], []>} : vector<8x32xf32>, vector<32x128xf32>, vector<8x128xf32> -> vector<8x128xf32>
    %109 = arith.addf %107, %108 : vector<8x128xf32>
    %110 = vector.extract_strided_slice %109 {offsets = [0, 0], sizes = [8, 96], strides = [1, 1]} : vector<8x128xf32> to vector<8x96xf32>
    %111 = arith.negf %110 : vector<8x96xf32>
    %112 = math.exp %111 : vector<8x96xf32>
    %cst_65 = arith.constant 1.000000e+00 : f32
    %113 = vector.broadcast %cst_65 : f32 to vector<8x96xf32>
    %114 = arith.addf %113, %112 : vector<8x96xf32>
    %115 = arith.divf %113, %114 : vector<8x96xf32>
    %116 = vector.extract_strided_slice %109 {offsets = [0, 96], sizes = [8, 32], strides = [1, 1]} : vector<8x128xf32> to vector<8x32xf32>
    %117 = math.tanh %116 : vector<8x32xf32>
    %118 = vector.extract_strided_slice %115 {offsets = [0, 0], sizes = [8, 32], strides = [1, 1]} : vector<8x96xf32> to vector<8x32xf32>
    %119 = vector.extract_strided_slice %115 {offsets = [0, 32], sizes = [8, 32], strides = [1, 1]} : vector<8x96xf32> to vector<8x32xf32>
    %120 = vector.extract_strided_slice %115 {offsets = [0, 64], sizes = [8, 32], strides = [1, 1]} : vector<8x96xf32> to vector<8x32xf32>
    %121 = arith.mulf %119, %105 : vector<8x32xf32>
    %122 = arith.mulf %118, %117 : vector<8x32xf32>
    %123 = arith.addf %121, %122 : vector<8x32xf32>
    %124 = math.tanh %123 : vector<8x32xf32>
    %125 = arith.mulf %120, %124 : vector<8x32xf32>
    %c0_66 = arith.constant 0 : index
    %c0_67 = arith.constant 0 : index
    %126 = vector.load %arg9[%c0_66, %c0_67] : memref<8x32xf32, #tpu.memory_space<vmem>>, vector<8x32xf32>
    tpu.vector_store %arg9[%c0_66, %c0_67], %125 {strides = array<i32>} : memref<8x32xf32, #tpu.memory_space<vmem>>, vector<8x32xf32>,
    %c0_68 = arith.constant 0 : index
    %c0_69 = arith.constant 0 : index
    %127 = vector.load %arg10[%c0_68, %c0_69] : memref<8x32xf32, #tpu.memory_space<vmem>>, vector<8x32xf32>
    tpu.vector_store %arg10[%c0_68, %c0_69], %123 {strides = array<i32>} : memref<8x32xf32, #tpu.memory_space<vmem>>, vector<8x32xf32>,
    %128 = arith.index_cast %103 : i32 to index
    %c0_70 = arith.constant 0 : index
    %129 = vector.load %arg7[%128, %c0_70] : memref<64x32xf32, #tpu.memory_space<vmem>>, vector<8x32xf32>
    tpu.vector_store %arg7[%128, %c0_70], %125 {strides = array<i32>} : memref<64x32xf32, #tpu.memory_space<vmem>>, vector<8x32xf32>,
    %c4_i32 = arith.constant 4 : i32
    %c8_i32_71 = arith.constant 8 : i32
    %130 = arith.muli %c4_i32, %c8_i32_71 : i32
    %131 = tpu.assume_multiple %130, 8 : i32
    %c0_72 = arith.constant 0 : index
    %c0_73 = arith.constant 0 : index
    %132 = vector.load %arg9[%c0_72, %c0_73] : memref<8x32xf32, #tpu.memory_space<vmem>>, vector<8x32xf32>
    %c0_74 = arith.constant 0 : index
    %c0_75 = arith.constant 0 : index
    %133 = vector.load %arg10[%c0_74, %c0_75] : memref<8x32xf32, #tpu.memory_space<vmem>>, vector<8x32xf32>
    %134 = arith.index_cast %131 : i32 to index
    %c0_76 = arith.constant 0 : index
    %135 = vector.load %arg8[%134, %c0_76] : memref<64x128xf32, #tpu.memory_space<vmem>>, vector<8x128xf32>
    %cst_77 = arith.constant dense<0.000000e+00> : vector<8x128xf32>
    %136 = tpu.matmul %132, %17, %cst_77 {dimension_numbers = #tpu.dot_dimension_numbers<[1], [0], [0], [1], [0, 0, 1, 1], [], []>} : vector<8x32xf32>, vector<32x128xf32>, vector<8x128xf32> -> vector<8x128xf32>
    %137 = arith.addf %135, %136 : vector<8x128xf32>
    %138 = vector.extract_strided_slice %137 {offsets = [0, 0], sizes = [8, 96], strides = [1, 1]} : vector<8x128xf32> to vector<8x96xf32>
    %139 = arith.negf %138 : vector<8x96xf32>
    %140 = math.exp %139 : vector<8x96xf32>
    %cst_78 = arith.constant 1.000000e+00 : f32
    %141 = vector.broadcast %cst_78 : f32 to vector<8x96xf32>
    %142 = arith.addf %141, %140 : vector<8x96xf32>
    %143 = arith.divf %141, %142 : vector<8x96xf32>
    %144 = vector.extract_strided_slice %137 {offsets = [0, 96], sizes = [8, 32], strides = [1, 1]} : vector<8x128xf32> to vector<8x32xf32>
    %145 = math.tanh %144 : vector<8x32xf32>
    %146 = vector.extract_strided_slice %143 {offsets = [0, 0], sizes = [8, 32], strides = [1, 1]} : vector<8x96xf32> to vector<8x32xf32>
    %147 = vector.extract_strided_slice %143 {offsets = [0, 32], sizes = [8, 32], strides = [1, 1]} : vector<8x96xf32> to vector<8x32xf32>
    %148 = vector.extract_strided_slice %143 {offsets = [0, 64], sizes = [8, 32], strides = [1, 1]} : vector<8x96xf32> to vector<8x32xf32>
    %149 = arith.mulf %147, %133 : vector<8x32xf32>
    %150 = arith.mulf %146, %145 : vector<8x32xf32>
    %151 = arith.addf %149, %150 : vector<8x32xf32>
    %152 = math.tanh %151 : vector<8x32xf32>
    %153 = arith.mulf %148, %152 : vector<8x32xf32>
    %c0_79 = arith.constant 0 : index
    %c0_80 = arith.constant 0 : index
    %154 = vector.load %arg9[%c0_79, %c0_80] : memref<8x32xf32, #tpu.memory_space<vmem>>, vector<8x32xf32>
    tpu.vector_store %arg9[%c0_79, %c0_80], %153 {strides = array<i32>} : memref<8x32xf32, #tpu.memory_space<vmem>>, vector<8x32xf32>,
    %c0_81 = arith.constant 0 : index
    %c0_82 = arith.constant 0 : index
    %155 = vector.load %arg10[%c0_81, %c0_82] : memref<8x32xf32, #tpu.memory_space<vmem>>, vector<8x32xf32>
    tpu.vector_store %arg10[%c0_81, %c0_82], %151 {strides = array<i32>} : memref<8x32xf32, #tpu.memory_space<vmem>>, vector<8x32xf32>,
    %156 = arith.index_cast %131 : i32 to index
    %c0_83 = arith.constant 0 : index
    %157 = vector.load %arg7[%156, %c0_83] : memref<64x32xf32, #tpu.memory_space<vmem>>, vector<8x32xf32>
    tpu.vector_store %arg7[%156, %c0_83], %153 {strides = array<i32>} : memref<64x32xf32, #tpu.memory_space<vmem>>, vector<8x32xf32>,
    %c5_i32 = arith.constant 5 : i32
    %c8_i32_84 = arith.constant 8 : i32
    %158 = arith.muli %c5_i32, %c8_i32_84 : i32
    %159 = tpu.assume_multiple %158, 8 : i32
    %c0_85 = arith.constant 0 : index
    %c0_86 = arith.constant 0 : index
    %160 = vector.load %arg9[%c0_85, %c0_86] : memref<8x32xf32, #tpu.memory_space<vmem>>, vector<8x32xf32>
    %c0_87 = arith.constant 0 : index
    %c0_88 = arith.constant 0 : index
    %161 = vector.load %arg10[%c0_87, %c0_88] : memref<8x32xf32, #tpu.memory_space<vmem>>, vector<8x32xf32>
    %162 = arith.index_cast %159 : i32 to index
    %c0_89 = arith.constant 0 : index
    %163 = vector.load %arg8[%162, %c0_89] : memref<64x128xf32, #tpu.memory_space<vmem>>, vector<8x128xf32>
    %cst_90 = arith.constant dense<0.000000e+00> : vector<8x128xf32>
    %164 = tpu.matmul %160, %17, %cst_90 {dimension_numbers = #tpu.dot_dimension_numbers<[1], [0], [0], [1], [0, 0, 1, 1], [], []>} : vector<8x32xf32>, vector<32x128xf32>, vector<8x128xf32> -> vector<8x128xf32>
    %165 = arith.addf %163, %164 : vector<8x128xf32>
    %166 = vector.extract_strided_slice %165 {offsets = [0, 0], sizes = [8, 96], strides = [1, 1]} : vector<8x128xf32> to vector<8x96xf32>
    %167 = arith.negf %166 : vector<8x96xf32>
    %168 = math.exp %167 : vector<8x96xf32>
    %cst_91 = arith.constant 1.000000e+00 : f32
    %169 = vector.broadcast %cst_91 : f32 to vector<8x96xf32>
    %170 = arith.addf %169, %168 : vector<8x96xf32>
    %171 = arith.divf %169, %170 : vector<8x96xf32>
    %172 = vector.extract_strided_slice %165 {offsets = [0, 96], sizes = [8, 32], strides = [1, 1]} : vector<8x128xf32> to vector<8x32xf32>
    %173 = math.tanh %172 : vector<8x32xf32>
    %174 = vector.extract_strided_slice %171 {offsets = [0, 0], sizes = [8, 32], strides = [1, 1]} : vector<8x96xf32> to vector<8x32xf32>
    %175 = vector.extract_strided_slice %171 {offsets = [0, 32], sizes = [8, 32], strides = [1, 1]} : vector<8x96xf32> to vector<8x32xf32>
    %176 = vector.extract_strided_slice %171 {offsets = [0, 64], sizes = [8, 32], strides = [1, 1]} : vector<8x96xf32> to vector<8x32xf32>
    %177 = arith.mulf %175, %161 : vector<8x32xf32>
    %178 = arith.mulf %174, %173 : vector<8x32xf32>
    %179 = arith.addf %177, %178 : vector<8x32xf32>
    %180 = math.tanh %179 : vector<8x32xf32>
    %181 = arith.mulf %176, %180 : vector<8x32xf32>
    %c0_92 = arith.constant 0 : index
    %c0_93 = arith.constant 0 : index
    %182 = vector.load %arg9[%c0_92, %c0_93] : memref<8x32xf32, #tpu.memory_space<vmem>>, vector<8x32xf32>
    tpu.vector_store %arg9[%c0_92, %c0_93], %181 {strides = array<i32>} : memref<8x32xf32, #tpu.memory_space<vmem>>, vector<8x32xf32>,
    %c0_94 = arith.constant 0 : index
    %c0_95 = arith.constant 0 : index
    %183 = vector.load %arg10[%c0_94, %c0_95] : memref<8x32xf32, #tpu.memory_space<vmem>>, vector<8x32xf32>
    tpu.vector_store %arg10[%c0_94, %c0_95], %179 {strides = array<i32>} : memref<8x32xf32, #tpu.memory_space<vmem>>, vector<8x32xf32>,
    %184 = arith.index_cast %159 : i32 to index
    %c0_96 = arith.constant 0 : index
    %185 = vector.load %arg7[%184, %c0_96] : memref<64x32xf32, #tpu.memory_space<vmem>>, vector<8x32xf32>
    tpu.vector_store %arg7[%184, %c0_96], %181 {strides = array<i32>} : memref<64x32xf32, #tpu.memory_space<vmem>>, vector<8x32xf32>,
    %c6_i32 = arith.constant 6 : i32
    %c8_i32_97 = arith.constant 8 : i32
    %186 = arith.muli %c6_i32, %c8_i32_97 : i32
    %187 = tpu.assume_multiple %186, 8 : i32
    %c0_98 = arith.constant 0 : index
    %c0_99 = arith.constant 0 : index
    %188 = vector.load %arg9[%c0_98, %c0_99] : memref<8x32xf32, #tpu.memory_space<vmem>>, vector<8x32xf32>
    %c0_100 = arith.constant 0 : index
    %c0_101 = arith.constant 0 : index
    %189 = vector.load %arg10[%c0_100, %c0_101] : memref<8x32xf32, #tpu.memory_space<vmem>>, vector<8x32xf32>
    %190 = arith.index_cast %187 : i32 to index
    %c0_102 = arith.constant 0 : index
    %191 = vector.load %arg8[%190, %c0_102] : memref<64x128xf32, #tpu.memory_space<vmem>>, vector<8x128xf32>
    %cst_103 = arith.constant dense<0.000000e+00> : vector<8x128xf32>
    %192 = tpu.matmul %188, %17, %cst_103 {dimension_numbers = #tpu.dot_dimension_numbers<[1], [0], [0], [1], [0, 0, 1, 1], [], []>} : vector<8x32xf32>, vector<32x128xf32>, vector<8x128xf32> -> vector<8x128xf32>
    %193 = arith.addf %191, %192 : vector<8x128xf32>
    %194 = vector.extract_strided_slice %193 {offsets = [0, 0], sizes = [8, 96], strides = [1, 1]} : vector<8x128xf32> to vector<8x96xf32>
    %195 = arith.negf %194 : vector<8x96xf32>
    %196 = math.exp %195 : vector<8x96xf32>
    %cst_104 = arith.constant 1.000000e+00 : f32
    %197 = vector.broadcast %cst_104 : f32 to vector<8x96xf32>
    %198 = arith.addf %197, %196 : vector<8x96xf32>
    %199 = arith.divf %197, %198 : vector<8x96xf32>
    %200 = vector.extract_strided_slice %193 {offsets = [0, 96], sizes = [8, 32], strides = [1, 1]} : vector<8x128xf32> to vector<8x32xf32>
    %201 = math.tanh %200 : vector<8x32xf32>
    %202 = vector.extract_strided_slice %199 {offsets = [0, 0], sizes = [8, 32], strides = [1, 1]} : vector<8x96xf32> to vector<8x32xf32>
    %203 = vector.extract_strided_slice %199 {offsets = [0, 32], sizes = [8, 32], strides = [1, 1]} : vector<8x96xf32> to vector<8x32xf32>
    %204 = vector.extract_strided_slice %199 {offsets = [0, 64], sizes = [8, 32], strides = [1, 1]} : vector<8x96xf32> to vector<8x32xf32>
    %205 = arith.mulf %203, %189 : vector<8x32xf32>
    %206 = arith.mulf %202, %201 : vector<8x32xf32>
    %207 = arith.addf %205, %206 : vector<8x32xf32>
    %208 = math.tanh %207 : vector<8x32xf32>
    %209 = arith.mulf %204, %208 : vector<8x32xf32>
    %c0_105 = arith.constant 0 : index
    %c0_106 = arith.constant 0 : index
    %210 = vector.load %arg9[%c0_105, %c0_106] : memref<8x32xf32, #tpu.memory_space<vmem>>, vector<8x32xf32>
    tpu.vector_store %arg9[%c0_105, %c0_106], %209 {strides = array<i32>} : memref<8x32xf32, #tpu.memory_space<vmem>>, vector<8x32xf32>,
    %c0_107 = arith.constant 0 : index
    %c0_108 = arith.constant 0 : index
    %211 = vector.load %arg10[%c0_107, %c0_108] : memref<8x32xf32, #tpu.memory_space<vmem>>, vector<8x32xf32>
    tpu.vector_store %arg10[%c0_107, %c0_108], %207 {strides = array<i32>} : memref<8x32xf32, #tpu.memory_space<vmem>>, vector<8x32xf32>,
    %212 = arith.index_cast %187 : i32 to index
    %c0_109 = arith.constant 0 : index
    %213 = vector.load %arg7[%212, %c0_109] : memref<64x32xf32, #tpu.memory_space<vmem>>, vector<8x32xf32>
    tpu.vector_store %arg7[%212, %c0_109], %209 {strides = array<i32>} : memref<64x32xf32, #tpu.memory_space<vmem>>, vector<8x32xf32>,
    %c7_i32 = arith.constant 7 : i32
    %c8_i32_110 = arith.constant 8 : i32
    %214 = arith.muli %c7_i32, %c8_i32_110 : i32
    %215 = tpu.assume_multiple %214, 8 : i32
    %c0_111 = arith.constant 0 : index
    %c0_112 = arith.constant 0 : index
    %216 = vector.load %arg9[%c0_111, %c0_112] : memref<8x32xf32, #tpu.memory_space<vmem>>, vector<8x32xf32>
    %c0_113 = arith.constant 0 : index
    %c0_114 = arith.constant 0 : index
    %217 = vector.load %arg10[%c0_113, %c0_114] : memref<8x32xf32, #tpu.memory_space<vmem>>, vector<8x32xf32>
    %218 = arith.index_cast %215 : i32 to index
    %c0_115 = arith.constant 0 : index
    %219 = vector.load %arg8[%218, %c0_115] : memref<64x128xf32, #tpu.memory_space<vmem>>, vector<8x128xf32>
    %cst_116 = arith.constant dense<0.000000e+00> : vector<8x128xf32>
    %220 = tpu.matmul %216, %17, %cst_116 {dimension_numbers = #tpu.dot_dimension_numbers<[1], [0], [0], [1], [0, 0, 1, 1], [], []>} : vector<8x32xf32>, vector<32x128xf32>, vector<8x128xf32> -> vector<8x128xf32>
    %221 = arith.addf %219, %220 : vector<8x128xf32>
    %222 = vector.extract_strided_slice %221 {offsets = [0, 0], sizes = [8, 96], strides = [1, 1]} : vector<8x128xf32> to vector<8x96xf32>
    %223 = arith.negf %222 : vector<8x96xf32>
    %224 = math.exp %223 : vector<8x96xf32>
    %cst_117 = arith.constant 1.000000e+00 : f32
    %225 = vector.broadcast %cst_117 : f32 to vector<8x96xf32>
    %226 = arith.addf %225, %224 : vector<8x96xf32>
    %227 = arith.divf %225, %226 : vector<8x96xf32>
    %228 = vector.extract_strided_slice %221 {offsets = [0, 96], sizes = [8, 32], strides = [1, 1]} : vector<8x128xf32> to vector<8x32xf32>
    %229 = math.tanh %228 : vector<8x32xf32>
    %230 = vector.extract_strided_slice %227 {offsets = [0, 0], sizes = [8, 32], strides = [1, 1]} : vector<8x96xf32> to vector<8x32xf32>
    %231 = vector.extract_strided_slice %227 {offsets = [0, 32], sizes = [8, 32], strides = [1, 1]} : vector<8x96xf32> to vector<8x32xf32>
    %232 = vector.extract_strided_slice %227 {offsets = [0, 64], sizes = [8, 32], strides = [1, 1]} : vector<8x96xf32> to vector<8x32xf32>
    %233 = arith.mulf %231, %217 : vector<8x32xf32>
    %234 = arith.mulf %230, %229 : vector<8x32xf32>
    %235 = arith.addf %233, %234 : vector<8x32xf32>
    %236 = math.tanh %235 : vector<8x32xf32>
    %237 = arith.mulf %232, %236 : vector<8x32xf32>
    %c0_118 = arith.constant 0 : index
    %c0_119 = arith.constant 0 : index
    %238 = vector.load %arg9[%c0_118, %c0_119] : memref<8x32xf32, #tpu.memory_space<vmem>>, vector<8x32xf32>
    tpu.vector_store %arg9[%c0_118, %c0_119], %237 {strides = array<i32>} : memref<8x32xf32, #tpu.memory_space<vmem>>, vector<8x32xf32>,
    %c0_120 = arith.constant 0 : index
    %c0_121 = arith.constant 0 : index
    %239 = vector.load %arg10[%c0_120, %c0_121] : memref<8x32xf32, #tpu.memory_space<vmem>>, vector<8x32xf32>
    tpu.vector_store %arg10[%c0_120, %c0_121], %235 {strides = array<i32>} : memref<8x32xf32, #tpu.memory_space<vmem>>, vector<8x32xf32>,
    %240 = arith.index_cast %215 : i32 to index
    %c0_122 = arith.constant 0 : index
    %241 = vector.load %arg7[%240, %c0_122] : memref<64x32xf32, #tpu.memory_space<vmem>>, vector<8x32xf32>
    tpu.vector_store %arg7[%240, %c0_122], %237 {strides = array<i32>} : memref<64x32xf32, #tpu.memory_space<vmem>>, vector<8x32xf32>,
    %c8_i32_123 = arith.constant 8 : i32
    %c0_124 = arith.constant 0 : index
    %c0_125 = arith.constant 0 : index
    %242 = vector.load %arg9[%c0_124, %c0_125] : memref<8x32xf32, #tpu.memory_space<vmem>>, vector<8x32xf32>
    %c0_126 = arith.constant 0 : index
    %c0_127 = arith.constant 0 : index
    %c0_128 = arith.constant 0 : index
    %243 = vector.load %arg5[%c0_126, %c0_127, %c0_128] : memref<1x8x32xf32, #tpu.memory_space<vmem>>, vector<1x8x32xf32>
    %244 = vector.shape_cast %243 : vector<1x8x32xf32> to vector<8x32xf32>
    %245 = vector.shape_cast %242 : vector<8x32xf32> to vector<1x8x32xf32>
    tpu.vector_store %arg5[%c0_126, %c0_127, %c0_128], %245 {strides = array<i32>} : memref<1x8x32xf32, #tpu.memory_space<vmem>>, vector<1x8x32xf32>,
    %c0_129 = arith.constant 0 : index
    %c0_130 = arith.constant 0 : index
    %246 = vector.load %arg10[%c0_129, %c0_130] : memref<8x32xf32, #tpu.memory_space<vmem>>, vector<8x32xf32>
    %c0_131 = arith.constant 0 : index
    %c0_132 = arith.constant 0 : index
    %c0_133 = arith.constant 0 : index
    %247 = vector.load %arg6[%c0_131, %c0_132, %c0_133] : memref<1x8x32xf32, #tpu.memory_space<vmem>>, vector<1x8x32xf32>
    %248 = vector.shape_cast %247 : vector<1x8x32xf32> to vector<8x32xf32>
    %249 = vector.shape_cast %246 : vector<8x32xf32> to vector<1x8x32xf32>
    tpu.vector_store %arg6[%c0_131, %c0_132, %c0_133], %249 {strides = array<i32>} : memref<1x8x32xf32, #tpu.memory_space<vmem>>, vector<1x8x32xf32>,
    return
  }
  func.func @transform_0(%arg0: i32) -> (i32, i32) {
    %c0_i32 = arith.constant 0 : i32
    %c0_i32_0 = arith.constant 0 : i32
    %c0_i32_1 = arith.constant 0 : i32
    return %c0_i32, %c0_i32_0 : i32, i32
  }
  func.func @transform_1(%arg0: i32) -> (i32, i32, i32) {
    %c0_i32 = arith.constant 0 : i32
    %c0_i32_0 = arith.constant 0 : i32
    %c0_i32_1 = arith.constant 0 : i32
    return %arg0, %c0_i32, %c0_i32_0 : i32, i32, i32
  }
  func.func @transform_2(%arg0: i32) -> (i32, i32, i32) {
    %c0_i32 = arith.constant 0 : i32
    %c0_i32_0 = arith.constant 0 : i32
    %c0_i32_1 = arith.constant 0 : i32
    return %arg0, %c0_i32, %c0_i32_0 : i32, i32, i32
  }
  func.func @transform_3(%arg0: i32) -> (i32, i32, i32) {
    %c0_i32 = arith.constant 0 : i32
    %c0_i32_0 = arith.constant 0 : i32
    %c0_i32_1 = arith.constant 0 : i32
    return %arg0, %c0_i32, %c0_i32_0 : i32, i32, i32
  }
  func.func @transform_4(%arg0: i32) -> (i32, i32, i32) {
    %c0_i32 = arith.constant 0 : i32
    %c0_i32_0 = arith.constant 0 : i32
    %c0_i32_1 = arith.constant 0 : i32
    return %arg0, %c0_i32, %c0_i32_0 : i32, i32, i32
  }
  func.func @transform_5(%arg0: i32) -> (i32, i32, i32) {
    %c0_i32 = arith.constant 0 : i32
    %c0_i32_0 = arith.constant 0 : i32
    %c0_i32_1 = arith.constant 0 : i32
    return %arg0, %c0_i32, %c0_i32_0 : i32, i32, i32
  }
}

</mosaic_0001>

<llo_original>
// kernel: tpu_custom_call.1
$region0: #{tpu_custom_call.1}
  #allocation0 [shape = 'u32[]', space=smem, size = 0x4, offset = 0x4, fixed_abs, tag = 'smem constant byte address 0x4 - core index']
  #allocation1 [shape = 'u32[144,128]{1,0:T(1,128)}', space=vmem, size = 0x12000, scoped, tag = 'internal scratch']
  #allocation2 [shape = 'f32[64,32]{1,0:T(8,128)}', space=vmem, size = 0x8000, scoped, tag = 'scratch operand']
  #allocation3 [shape = 'f32[64,128]{1,0:T(8,128)}', space=vmem, size = 0x8000, scoped, tag = 'scratch operand']
  #allocation4 [shape = 'f32[8,32]{1,0:T(8,128)}', space=vmem, size = 0x1000, scoped, tag = 'scratch operand']
  #allocation5 [shape = 'f32[8,32]{1,0:T(8,128)}', space=vmem, size = 0x1000, scoped, tag = 'scratch operand']
  %s0 = inlined_call_operand.vmem [shape: f32[64,32], index: 0, kind: input, shape index: {}]
  %s1 = inlined_call_operand.vmem [shape: f32[2,32,128], index: 1, kind: input, shape index: {}]
  %s2 = inlined_call_operand.hbm [shape: f32[2,32,128], index: 2, kind: input, shape index: {}]
  %s3 = inlined_call_operand.vmem [shape: f32[2,1,128], index: 3, kind: input, shape index: {}]
  %s4 = inlined_call_operand.hbm [shape: f32[2,8,32], index: 4, kind: output, shape index: {0}]
  %s5 = inlined_call_operand.hbm [shape: f32[2,8,32], index: 5, kind: output, shape index: {1}]
  %6 = xla_tuple %s4, %s5
  %s7 = sld [smem:[#allocation0]]
  $region65: #{tpu_custom_call.1} parent=0
    _
  %s9 = ssub.s32 1, %s7
  %s10 = scalar_select 0, %s9, %s7
  $region1: #{tpu_custom_call.1} parent=0
    #allocation6 [shape = 'u8[32768]{0}', space=vmem, size = 0x8000, scoped, tag = 'input window, operand 2']
    #allocation7 [shape = 's32[2]{0}', space=sflag, size = 0x8, scoped, tag = 'scoped memory for tpu_custom_call.1']
    #allocation8 [shape = 's32[2]{0}', space=sflag, size = 0x8, scoped, tag = 'scoped memory for tpu_custom_call.1']
    #allocation9 [shape = 'u8[8192]{0}', space=vmem, size = 0x2000, scoped, tag = 'output window, operand 0']
    #allocation10 [shape = 'u8[8192]{0}', space=vmem, size = 0x2000, scoped, tag = 'output window, operand 1']
    #allocation11 [shape = 's32[2]{0}', space=sflag, size = 0x8, scoped, tag = 'scoped memory for tpu_custom_call.1']
    %11 = vsyncpa [#allocation7], 0
    %s12 = scalar_lea.sflag [#allocation7], 1
    %13 = vsyncpa %s12, 0
    %14 = vsyncpa [#allocation8], 0
    %s15 = scalar_lea.sflag [#allocation8], 1
    %16 = vsyncpa %s15, 0
    %17 = vsyncpa [#allocation11], 0
    %s18 = scalar_lea.sflag [#allocation11], 1
    %19 = vsyncpa %s18, 0
    loop: start=0, step=1, limit=4
    $region2: #{tpu_custom_call.1} parent=1 // loop_pre_header
      _
    $region3: #{tpu_custom_call.1} parent=1 // loop_header
      %s21 = sphi 0, %s25
      %p22 = scmp.ge.s32.totalorder %s21, 4
      %s29 = sphi 0, %s29
      %s31 = sphi 0, %s29
      %s32 = sphi 0, %s31
      %s46 = sphi 0, %s32
      %s52 = sphi 0, %s54
      %s55 = sphi 0, %s52
      %s56 = sphi 0, %s55
      %s72 = sphi 0, %s56
      %s78 = sphi 0, %s80
      %s81 = sphi 0, %s78
      %s82 = sphi 0, %s81
      %s98 = sphi 0, %s82
      %s104 = sphi 0, %s106
      %s107 = sphi 0, %s104
      %s108 = sphi 0, %s107
      %s124 = sphi 0, %s108
      %s130 = sphi 0, %s132
      %s133 = sphi 0, %s130
      %s134 = sphi 0, %s133
      %s150 = sphi 0, %s134
      %s156 = sphi 0, %s158
      %s159 = sphi 0, %s156
      %s160 = sphi 0, %s159
      %s176 = sphi 0, %s160
    $region4: #{tpu_custom_call.1} parent=1 // loop_header_branch
      %24 = sbr.rel (%p22) target = $region8
    $region5: #{tpu_custom_call.1} parent=1 // loop_body
      %s26 = ssub.s32 %s21, 1
      %s27 = ssub.s32 %s21, 2
      %s28 = sadd.s32 %s21, 1
      %s30 = sadd.s32 %s29, 1
      %p33 = scmp.eq.s32.totalorder %s21, 1
      %p34 = scmp.ne.s32.totalorder %s29, %s31
      %p35 = scmp.eq.s32.totalorder %s21, 0
      %p36 = por %p34, %p35
      %p37 = scmp.ne.s32.totalorder %s29, %s31
      %p38 = scmp.eq.s32.totalorder %s26, 1
      %p39 = por %p37, %p38
      %p40 = scmp.ne.s32.totalorder %s31, %s32
      %p41 = scmp.eq.s32.totalorder %s26, 0
      %p42 = por %p40, %p41
      %p43 = scmp.ne.s32.totalorder %s31, %s32
      %p44 = scmp.eq.s32.totalorder %s27, 1
      %p45 = por %p43, %p44
      %p47 = scmp.ne.s32.totalorder %s32, %s46
      %p48 = scmp.eq.s32.totalorder %s27, 0
      %p49 = por %p47, %p48
      %s50 = ssub.s32 %s21, %s28
      %p51 = scmp.eq.s32.totalorder %s50, 0
      %s53 = sadd.s32 %s52, 1
      %s54 = scalar_select %p51, %s52, %s53
      %p57 = pneg %p51
      %p58 = scmp.eq.s32.totalorder %s21, 1
      %p59 = por %p57, %p58
      %p60 = scmp.ne.s32.totalorder %s52, %s55
      %p61 = scmp.eq.s32.totalorder %s21, 0
      %p62 = por %p60, %p61
      %p63 = scmp.ne.s32.totalorder %s52, %s55
      %p64 = scmp.eq.s32.totalorder %s26, 1
      %p65 = por %p63, %p64
      %p66 = scmp.ne.s32.totalorder %s55, %s56
      %p67 = scmp.eq.s32.totalorder %s26, 0
      %p68 = por %p66, %p67
      %p69 = scmp.ne.s32.totalorder %s55, %s56
      %p70 = scmp.eq.s32.totalorder %s27, 1
      %p71 = por %p69, %p70
      %p73 = scmp.ne.s32.totalorder %s56, %s72
      %p74 = scmp.eq.s32.totalorder %s27, 0
      %p75 = por %p73, %p74
      %s76 = ssub.s32 %s21, %s28
      %p77 = scmp.eq.s32.totalorder %s76, 0
      %s79 = sadd.s32 %s78, 1
      %s80 = scalar_select %p77, %s78, %s79
      %p83 = pneg %p77
      %p84 = scmp.eq.s32.totalorder %s21, 1
      %p85 = por %p83, %p84
      %p86 = scmp.ne.s32.totalorder %s78, %s81
      %p87 = scmp.eq.s32.totalorder %s21, 0
      %p88 = por %p86, %p87
      %p89 = scmp.ne.s32.totalorder %s78, %s81
      %p90 = scmp.eq.s32.totalorder %s26, 1
      %p91 = por %p89, %p90
      %p92 = scmp.ne.s32.totalorder %s81, %s82
      %p93 = scmp.eq.s32.totalorder %s26, 0
      %p94 = por %p92, %p93
      %p95 = scmp.ne.s32.totalorder %s81, %s82
      %p96 = scmp.eq.s32.totalorder %s27, 1
      %p97 = por %p95, %p96
      %p99 = scmp.ne.s32.totalorder %s82, %s98
      %p100 = scmp.eq.s32.totalorder %s27, 0
      %p101 = por %p99, %p100
      %s102 = ssub.s32 %s21, %s28
      %p103 = scmp.eq.s32.totalorder %s102, 0
      %s105 = sadd.s32 %s104, 1
      %s106 = scalar_select %p103, %s104, %s105
      %p109 = pneg %p103
      %p110 = scmp.eq.s32.totalorder %s21, 1
      %p111 = por %p109, %p110
      %p112 = scmp.ne.s32.totalorder %s104, %s107
      %p113 = scmp.eq.s32.totalorder %s21, 0
      %p114 = por %p112, %p113
      %p115 = scmp.ne.s32.totalorder %s104, %s107
      %p116 = scmp.eq.s32.totalorder %s26, 1
      %p117 = por %p115, %p116
      %p118 = scmp.ne.s32.totalorder %s107, %s108
      %p119 = scmp.eq.s32.totalorder %s26, 0
      %p120 = por %p118, %p119
      %p121 = scmp.ne.s32.totalorder %s107, %s108
      %p122 = scmp.eq.s32.totalorder %s27, 1
      %p123 = por %p121, %p122
      %p125 = scmp.ne.s32.totalorder %s108, %s124
      %p126 = scmp.eq.s32.totalorder %s27, 0
      %p127 = por %p125, %p126
      %s128 = ssub.s32 %s21, %s28
      %p129 = scmp.eq.s32.totalorder %s128, 0
      %s131 = sadd.s32 %s130, 1
      %s132 = scalar_select %p129, %s130, %s131
      %p135 = pneg %p129
      %p136 = scmp.eq.s32.totalorder %s21, 1
      %p137 = por %p135, %p136
      %p138 = scmp.ne.s32.totalorder %s130, %s133
      %p139 = scmp.eq.s32.totalorder %s21, 0
      %p140 = por %p138, %p139
      %p141 = scmp.ne.s32.totalorder %s130, %s133
      %p142 = scmp.eq.s32.totalorder %s26, 1
      %p143 = por %p141, %p142
      %p144 = scmp.ne.s32.totalorder %s133, %s134
      %p145 = scmp.eq.s32.totalorder %s26, 0
      %p146 = por %p144, %p145
      %p147 = scmp.ne.s32.totalorder %s133, %s134
      %p148 = scmp.eq.s32.totalorder %s27, 1
      %p149 = por %p147, %p148
      %p151 = scmp.ne.s32.totalorder %s134, %s150
      %p152 = scmp.eq.s32.totalorder %s27, 0
      %p153 = por %p151, %p152
      %s154 = ssub.s32 %s21, %s28
      %p155 = scmp.eq.s32.totalorder %s154, 0
      %s157 = sadd.s32 %s156, 1
      %s158 = scalar_select %p155, %s156, %s157
      %p161 = pneg %p155
      %p162 = scmp.eq.s32.totalorder %s21, 1
      %p163 = por %p161, %p162
      %p164 = scmp.ne.s32.totalorder %s156, %s159
      %p165 = scmp.eq.s32.totalorder %s21, 0
      %p166 = por %p164, %p165
      %p167 = scmp.ne.s32.totalorder %s156, %s159
      %p168 = scmp.eq.s32.totalorder %s26, 1
      %p169 = por %p167, %p168
      %p170 = scmp.ne.s32.totalorder %s159, %s160
      %p171 = scmp.eq.s32.totalorder %s26, 0
      %p172 = por %p170, %p171
      %p173 = scmp.ne.s32.totalorder %s159, %s160
      %p174 = scmp.eq.s32.totalorder %s27, 1
      %p175 = por %p173, %p174
      %p177 = scmp.ne.s32.totalorder %s160, %s176
      %p178 = scmp.eq.s32.totalorder %s27, 0
      %p179 = por %p177, %p178
      %p180 = scmp.le.s32.totalorder 1, %s21
      %p181 = scmp.lt.s32.totalorder %s21, 3
      %p182 = pnand %p180, %p181
      %p183 = pneg %p182
      // Predicated region
      $region9: #{tpu_custom_call.1} parent=5 // pred_check
        _
      $region10: #{tpu_custom_call.1} parent=5 // pred_check_branch
        %185 = sbr.rel (%p182) target = $region12
      $region11: #{tpu_custom_call.1} parent=5 // pred_region
        %s186 = ssub.s32 %s21, 1
        // Predicated region
        $region13: #{tpu_custom_call.1} parent=11 // pred_check
          %p187 = pneg %p42
        $region14: #{tpu_custom_call.1} parent=11 // pred_check_branch
          %189 = sbr.rel (%p187) target = $region16
        $region15: #{tpu_custom_call.1} parent=11 // pred_region
          _
        $region16: #{tpu_custom_call.1} parent=11 // pred_fallthru
          _
      $region12: #{tpu_custom_call.1} parent=5 // pred_fallthru
        _
      %p190 = scmp.lt.s32.totalorder %s21, 2
      // Predicated region
      $region17: #{tpu_custom_call.1} parent=5 // pred_check
        %p191 = pneg %p190
      $region18: #{tpu_custom_call.1} parent=5 // pred_check_branch
        %193 = sbr.rel (%p191) target = $region20
      $region19: #{tpu_custom_call.1} parent=5 // pred_region
        // Predicated region
        $region21: #{tpu_custom_call.1} parent=19 // pred_check
          %p194 = pneg %p62
        $region22: #{tpu_custom_call.1} parent=19 // pred_check_branch
          %196 = sbr.rel (%p194) target = $region24
        $region23: #{tpu_custom_call.1} parent=19 // pred_region
          %p197 = scmp.lt.s32.totalorder %s21, 1
          %s198 = scalar_select %p197, %s21, 1
          %s199 = smul.addr %s198, 4
          %s200 = smul.addr %s199, 8
          %s201 = scalar_lea.vmem %s1, %s200
        $region24: #{tpu_custom_call.1} parent=19 // pred_fallthru
          _
        // Predicated region
        $region25: #{tpu_custom_call.1} parent=19 // pred_check
          %p202 = pneg %p88
        $region26: #{tpu_custom_call.1} parent=19 // pred_check_branch
          %204 = sbr.rel (%p202) target = $region28
        $region27: #{tpu_custom_call.1} parent=19 // pred_region
          %s205 = sand.u32 %s78, 1
          %s206 = scalar_lea.sflag [#allocation7], %s205
          %s207 = sand.u32 %s78, 1
          %s208 = smul.addr %s207, 32
          %s209 = scalar_lea.vmem [#allocation6], %s208
          %s211 = ssub.s32 512, 512
          %212 = vsyncadd %s206, %s211
          %s213 = smul.addr %s21, 4
          %s214 = smul.addr %s213, 128
          %s215 = scalar_lea.hbm %s2, %s214
          %s216 = sshll.u32 %s209, 4
          %s217 = int_to_ptr.vmem [resolvable:$true] %s216
          %222 = dma.hbm_to_vmem [thread:$0]  %s215, 512, %s217, %s206, 128, 128, 8
        $region28: #{tpu_custom_call.1} parent=19 // pred_fallthru
          _
        // Predicated region
        $region29: #{tpu_custom_call.1} parent=19 // pred_check
          %p223 = pneg %p114
        $region30: #{tpu_custom_call.1} parent=19 // pred_check_branch
          %225 = sbr.rel (%p223) target = $region32
        $region31: #{tpu_custom_call.1} parent=19 // pred_region
          %p226 = scmp.lt.s32.totalorder %s21, 1
          %s227 = scalar_select %p226, %s21, 1
          %s228 = scalar_lea.vmem %s3, %s227
        $region32: #{tpu_custom_call.1} parent=19 // pred_fallthru
          _
      $region20: #{tpu_custom_call.1} parent=5 // pred_fallthru
        _
      %p229 = scmp.le.s32.totalorder 1, %s21
      %p230 = scmp.lt.s32.totalorder %s21, 3
      %p231 = pnand %p229, %p230
      %p232 = pneg %p231
      // Predicated region
      $region33: #{tpu_custom_call.1} parent=5 // pred_check
        _
      $region34: #{tpu_custom_call.1} parent=5 // pred_check_branch
        %234 = sbr.rel (%p231) target = $region36
      $region35: #{tpu_custom_call.1} parent=5 // pred_region
        %s235 = ssub.s32 %s21, 1
        %s236 = sand.u32 %s81, 1
        %s237 = scalar_lea.sflag [#allocation7], %s236
        %s238 = sand.u32 %s81, 1
        %s239 = smul.addr %s238, 32
        %s240 = scalar_lea.vmem [#allocation6], %s239
        // Predicated region
        $region37: #{tpu_custom_call.1} parent=35 // pred_check
          %p241 = pneg %p94
        $region38: #{tpu_custom_call.1} parent=35 // pred_check_branch
          %243 = sbr.rel (%p241) target = $region40
        $region39: #{tpu_custom_call.1} parent=35 // pred_region
          %244 = dma.done %s237, 512
        $region40: #{tpu_custom_call.1} parent=35 // pred_fallthru
          _
        %p245 = pneg %p42
        %p246 = pneg %p39
        %p247 = scmp.lt.s32.totalorder %s26, 1
        %s248 = scalar_select %p247, %s26, 1
        %s249 = smul.addr %s248, 4
        %s250 = smul.addr %s249, 8
        %s251 = scalar_lea.vmem %s1, %s250
        %p252 = pneg %p68
        %p253 = pneg %p65
        %s254 = sand.u32 %s81, 1
        %s255 = scalar_lea.sflag [#allocation7], %s254
        %s256 = sand.u32 %s81, 1
        %s257 = smul.addr %s256, 32
        %s258 = scalar_lea.vmem [#allocation6], %s257
        %p259 = pneg %p94
        %p260 = pneg %p91
        %p261 = scmp.lt.s32.totalorder %s26, 1
        %s262 = scalar_select %p261, %s26, 1
        %s263 = scalar_lea.vmem %s3, %s262
        %p264 = pneg %p120
        %p265 = pneg %p117
        %p266 = pneg %p146
        %p267 = pneg %p143
        %s268 = sand.u32 %s133, 1
        %s269 = scalar_lea.sflag [#allocation8], %s268
        %s270 = sand.u32 %s133, 1
        %s271 = smul.addr %s270, 8
        %s272 = scalar_lea.vmem [#allocation9], %s271
        %p273 = pneg %p172
        %p274 = pneg %p169
        %s275 = sand.u32 %s159, 1
        %s276 = scalar_lea.sflag [#allocation11], %s275
        %s277 = sand.u32 %s159, 1
        %s278 = smul.addr %s277, 8
        %s279 = scalar_lea.vmem [#allocation10], %s278
        %p280 = scmp.lt.s32.totalorder %s26, 1
        %s281 = scalar_select %p280, %s26, 1
        %s282 = smul.addr %s281, 4
        %s283 = smul.addr %s282, 8
        %s284 = scalar_lea.vmem %s1, %s283
        %p285 = scmp.lt.s32.totalorder %s26, 1
        %s286 = scalar_select %p285, %s26, 1
        %s287 = scalar_lea.vmem %s3, %s286
        %p288 = scmp.eq.s32.totalorder %s26, 0
        // Predicated region
        $region41: #{tpu_custom_call.1} parent=35 // pred_check
          %p289 = pneg %p288
        $region42: #{tpu_custom_call.1} parent=35 // pred_check_branch
          %291 = sbr.rel (%p289) target = $region44
        $region43: #{tpu_custom_call.1} parent=35 // pred_region
          %v292 = vld [vmem:[%s0] sm:$0xff]
          %v293 = vld [vmem:[%s0 + $0x8] sm:$0xff]
          %v294 = vld [vmem:[%s0 + $0x10] sm:$0xff]
          %v295 = vld [vmem:[%s0 + $0x18] sm:$0xff]
          %v296 = vld [vmem:[%s0 + $0x20] sm:$0xff]
          %v297 = vld [vmem:[%s0 + $0x28] sm:$0xff]
          %v298 = vld [vmem:[%s0 + $0x30] sm:$0xff]
          %v299 = vld [vmem:[%s0 + $0x38] sm:$0xff]
          %vm300 = vcmask 261120
          %301 = vst.msk [vmem:[#allocation2] sm:$0xff] %vm300, %v292
          %302 = vst.msk [vmem:[#allocation2 + $0x8] sm:$0xff] %vm300, %v293
          %303 = vst.msk [vmem:[#allocation2 + $0x10] sm:$0xff] %vm300, %v294
          %304 = vst.msk [vmem:[#allocation2 + $0x18] sm:$0xff] %vm300, %v295
          %305 = vst.msk [vmem:[#allocation2 + $0x20] sm:$0xff] %vm300, %v296
          %306 = vst.msk [vmem:[#allocation2 + $0x28] sm:$0xff] %vm300, %v297
          %307 = vst.msk [vmem:[#allocation2 + $0x30] sm:$0xff] %vm300, %v298
          %308 = vst.msk [vmem:[#allocation2 + $0x38] sm:$0xff] %vm300, %v299
        $region44: #{tpu_custom_call.1} parent=35 // pred_fallthru
          _
        %v309 = vld [vmem:[#allocation2] sm:$0xff]
        %v310 = vld [vmem:[#allocation2 + $0x8] sm:$0xff]
        %v311 = vld [vmem:[#allocation2 + $0x10] sm:$0xff]
        %v312 = vld [vmem:[#allocation2 + $0x18] sm:$0xff]
        %v313 = vld [vmem:[#allocation2 + $0x20] sm:$0xff]
        %v314 = vld [vmem:[#allocation2 + $0x28] sm:$0xff]
        %v315 = vld [vmem:[#allocation2 + $0x30] sm:$0xff]
        %v316 = vld [vmem:[#allocation2 + $0x38] sm:$0xff]
        %v317 = vld [vmem:[%s284] sm:$0xff]
        %v318 = vld [vmem:[%s284 + $0x8] sm:$0xff]
        %v319 = vld [vmem:[%s284 + $0x10] sm:$0xff]
        %v320 = vld [vmem:[%s284 + $0x18] sm:$0xff]
        %v321 = vld [vmem:[%s287] sm:$0x1]
        %v323 = vlaneseq
        %v324 = vshrl.u32 %v323, 7
        %v325 = vsub.s32 0, %v324
        %v326 = vrot.slane %v321, %v325
        %vm328 = vcmask 261120
        %v330 = vsel %vm328, %v309, 0
        %v333 = vsel %vm328, %v310, 0
        %v336 = vsel %vm328, %v311, 0
        %v339 = vsel %vm328, %v312, 0
        %v342 = vsel %vm328, %v313, 0
        %v345 = vsel %vm328, %v314, 0
        %v348 = vsel %vm328, %v315, 0
        %v351 = vsel %vm328, %v316, 0
        %353 = vmatprep.subr.mxu0 0.0
        %354 = vmatpush1.msra.mxu0 %v317
        %355 = vmatprep.subr.mxu0 0.0
        %356 = vmatpush1.msra.mxu0 %v318
        %357 = vmatprep.subr.mxu0 0.0
        %358 = vmatpush1.msra.mxu0 %v319
        %359 = vmatprep.subr.mxu0 0.0
        %360 = vmatpush1.msra.mxu0 %v320
        %361 = vmatprep.subr.mxu0 0.0
        %362 = vmatpush1.msra.mxu0 0.0
        %363 = vmatprep.subr.mxu0 0.0
        %364 = vmatpush1.msra.mxu0 0.0
        %365 = vmatprep.subr.mxu0 0.0
        %366 = vmatpush1.msra.mxu0 0.0
        %367 = vmatprep.subr.mxu0 0.0
        %368 = vmatpush1.msra.mxu0 0.0
        %369 = vmatprep.subr.mxu0 0.0
        %370 = vmatpush1.msra.mxu0 0.0
        %371 = vmatprep.subr.mxu0 0.0
        %372 = vmatpush1.msra.mxu0 0.0
        %373 = vmatprep.subr.mxu0 0.0
        %374 = vmatpush1.msra.mxu0 0.0
        %375 = vmatprep.subr.mxu0 0.0
        %376 = vmatpush1.msra.mxu0 0.0
        %377 = vmatprep.subr.mxu0 0.0
        %378 = vmatpush1.msra.mxu0 0.0
        %379 = vmatprep.subr.mxu0 0.0
        %380 = vmatpush1.msra.mxu0 0.0
        %381 = vmatprep.subr.mxu0 0.0
        %382 = vmatpush1.msra.mxu0 0.0
        %383 = vmatprep.subr.mxu0 0.0
        %384 = vmatpush1.msra.mxu0 0.0
        %385 = vmatprep.subr.mxu0 0.0
        %386 = vmatpush1.msra.mxu0 0.0
        %387 = vmatprep.subr.mxu0 0.0
        %388 = vmatpush1.msra.mxu0 0.0
        %389 = vmatprep.subr.mxu0 0.0
        %390 = vmatpush1.msra.mxu0 0.0
        %391 = vmatprep.subr.mxu0 0.0
        %392 = vmatpush1.msra.mxu0 0.0
        %393 = vmatprep.subr.mxu0 0.0
        %394 = vmatpush1.msra.mxu0 0.0
        %395 = vmatprep.subr.mxu0 0.0
        %396 = vmatpush1.msra.mxu0 0.0
        %397 = vmatprep.subr.mxu0 0.0
        %398 = vmatpush1.msra.mxu0 0.0
        %399 = vmatprep.subr.mxu0 0.0
        %400 = vmatpush1.msra.mxu0 0.0
        %401 = vmatprep.subr.mxu0 0.0
        %402 = vmatpush1.msra.mxu0 0.0
        %403 = vmatprep.subr.mxu0 0.0
        %404 = vmatpush1.msra.mxu0 0.0
        %405 = vmatprep.subr.mxu0 0.0
        %406 = vmatpush1.msra.mxu0 0.0
        %407 = vmatprep.subr.mxu0 0.0
        %408 = vmatpush1.msra.mxu0 0.0
        %409 = vmatprep.subr.mxu0 0.0
        %410 = vmatpush1.msra.mxu0 0.0
        %411 = vmatprep.subr.mxu0 0.0
        %412 = vmatpush1.msra.mxu0 0.0
        %413 = vmatprep.subr.mxu0 0.0
        %414 = vmatpush1.msra.mxu0 0.0
        %415 = vmatprep.subr.mxu0 0.0
        %416 = vmatpush1.msra.mxu0 0.0
        %417 = vmatprep.mubr.f32.mxu0 0.0
        %418 = vmatmul.mubr.f32.gmra.mrb[0].mxu0 %v330
        %v419 = vpop.f32.mrb[0].mxu0
        %v420 = vadd.f32 %v326, %v419
        %v421 = vpop.f32.mrb[0].mxu0
        %422 = vmatprep.mubr.f32.mxu0 0.0
        %423 = vmatmul.mubr.f32.gmra.mrb[0].mxu0 %v333
        %v424 = vpop.f32.mrb[0].mxu0
        %v425 = vadd.f32 %v326, %v424
        %v426 = vpop.f32.mrb[0].mxu0
        %427 = vmatprep.mubr.f32.mxu0 0.0
        %428 = vmatmul.mubr.f32.gmra.mrb[0].mxu0 %v336
        %v429 = vpop.f32.mrb[0].mxu0
        %v430 = vadd.f32 %v326, %v429
        %v431 = vpop.f32.mrb[0].mxu0
        %432 = vmatprep.mubr.f32.mxu0 0.0
        %433 = vmatmul.mubr.f32.gmra.mrb[0].mxu0 %v339
        %v434 = vpop.f32.mrb[0].mxu0
        %v435 = vadd.f32 %v326, %v434
        %v436 = vpop.f32.mrb[0].mxu0
        %437 = vmatprep.mubr.f32.mxu0 0.0
        %438 = vmatmul.mubr.f32.gmra.mrb[0].mxu0 %v342
        %v439 = vpop.f32.mrb[0].mxu0
        %v440 = vadd.f32 %v326, %v439
        %v441 = vpop.f32.mrb[0].mxu0
        %442 = vmatprep.mubr.f32.mxu0 0.0
        %443 = vmatmul.mubr.f32.gmra.mrb[0].mxu0 %v345
        %v444 = vpop.f32.mrb[0].mxu0
        %v445 = vadd.f32 %v326, %v444
        %v446 = vpop.f32.mrb[0].mxu0
        %447 = vmatprep.mubr.f32.mxu0 0.0
        %448 = vmatmul.mubr.f32.gmra.mrb[0].mxu0 %v348
        %v449 = vpop.f32.mrb[0].mxu0
        %v450 = vadd.f32 %v326, %v449
        %v451 = vpop.f32.mrb[0].mxu0
        %452 = vmatprep.mubr.f32.mxu0 0.0
        %453 = vmatmul.mubr.f32.gmra.mrb[0].mxu0 %v351
        %v454 = vpop.f32.mrb[0].mxu0
        %v455 = vadd.f32 %v326, %v454
        %v456 = vpop.f32.mrb[0].mxu0
        %457 = vdwg.mxu0
        %458 = vst [vmem:[#allocation3] sm:$0xff] %v420
        %459 = vst [vmem:[#allocation3 + $0x8] sm:$0xff] %v425
        %460 = vst [vmem:[#allocation3 + $0x10] sm:$0xff] %v430
        %461 = vst [vmem:[#allocation3 + $0x18] sm:$0xff] %v435
        %462 = vst [vmem:[#allocation3 + $0x20] sm:$0xff] %v440
        %463 = vst [vmem:[#allocation3 + $0x28] sm:$0xff] %v445
        %464 = vst [vmem:[#allocation3 + $0x30] sm:$0xff] %v450
        %465 = vst [vmem:[#allocation3 + $0x38] sm:$0xff] %v455
        %466 = vst.msk [vmem:[#allocation4] sm:$0xff] %vm328, 0.0
        %467 = vst.msk [vmem:[#allocation5] sm:$0xff] %vm328, 0.0
        %v468 = vld [vmem:[%s240] sm:$0xff]
        %v469 = vld [vmem:[%s240 + $0x8] sm:$0xff]
        %v470 = vld [vmem:[%s240 + $0x10] sm:$0xff]
        %v471 = vld [vmem:[%s240 + $0x18] sm:$0xff]
        %v472 = vld [vmem:[#allocation4] sm:$0xff]
        %v473 = vld [vmem:[#allocation5] sm:$0xff]
        %v474 = vld [vmem:[#allocation3] sm:$0xff]
        %v476 = vsel %vm328, %v472, 0
        %478 = vmatprep.subr.mxu0 0.0
        %479 = vmatpush1.msra.mxu0 %v468
        %480 = vmatprep.subr.mxu0 0.0
        %481 = vmatpush1.msra.mxu0 %v469
        %482 = vmatprep.subr.mxu0 0.0
        %483 = vmatpush1.msra.mxu0 %v470
        %484 = vmatprep.subr.mxu0 0.0
        %485 = vmatpush1.msra.mxu0 %v471
        %486 = vmatprep.subr.mxu0 0.0
        %487 = vmatpush1.msra.mxu0 0.0
        %488 = vmatprep.subr.mxu0 0.0
        %489 = vmatpush1.msra.mxu0 0.0
        %490 = vmatprep.subr.mxu0 0.0
        %491 = vmatpush1.msra.mxu0 0.0
        %492 = vmatprep.subr.mxu0 0.0
        %493 = vmatpush1.msra.mxu0 0.0
        %494 = vmatprep.subr.mxu0 0.0
        %495 = vmatpush1.msra.mxu0 0.0
        %496 = vmatprep.subr.mxu0 0.0
        %497 = vmatpush1.msra.mxu0 0.0
        %498 = vmatprep.subr.mxu0 0.0
        %499 = vmatpush1.msra.mxu0 0.0
        %500 = vmatprep.subr.mxu0 0.0
        %501 = vmatpush1.msra.mxu0 0.0
        %502 = vmatprep.subr.mxu0 0.0
        %503 = vmatpush1.msra.mxu0 0.0
        %504 = vmatprep.subr.mxu0 0.0
        %505 = vmatpush1.msra.mxu0 0.0
        %506 = vmatprep.subr.mxu0 0.0
        %507 = vmatpush1.msra.mxu0 0.0
        %508 = vmatprep.subr.mxu0 0.0
        %509 = vmatpush1.msra.mxu0 0.0
        %510 = vmatprep.subr.mxu0 0.0
        %511 = vmatpush1.msra.mxu0 0.0
        %512 = vmatprep.subr.mxu0 0.0
        %513 = vmatpush1.msra.mxu0 0.0
        %514 = vmatprep.subr.mxu0 0.0
        %515 = vmatpush1.msra.mxu0 0.0
        %516 = vmatprep.subr.mxu0 0.0
        %517 = vmatpush1.msra.mxu0 0.0
        %518 = vmatprep.subr.mxu0 0.0
        %519 = vmatpush1.msra.mxu0 0.0
        %520 = vmatprep.subr.mxu0 0.0
        %521 = vmatpush1.msra.mxu0 0.0
        %522 = vmatprep.subr.mxu0 0.0
        %523 = vmatpush1.msra.mxu0 0.0
        %524 = vmatprep.subr.mxu0 0.0
        %525 = vmatpush1.msra.mxu0 0.0
        %526 = vmatprep.subr.mxu0 0.0
        %527 = vmatpush1.msra.mxu0 0.0
        %528 = vmatprep.subr.mxu0 0.0
        %529 = vmatpush1.msra.mxu0 0.0
        %530 = vmatprep.subr.mxu0 0.0
        %531 = vmatpush1.msra.mxu0 0.0
        %532 = vmatprep.subr.mxu0 0.0
        %533 = vmatpush1.msra.mxu0 0.0
        %534 = vmatprep.subr.mxu0 0.0
        %535 = vmatpush1.msra.mxu0 0.0
        %536 = vmatprep.subr.mxu0 0.0
        %537 = vmatpush1.msra.mxu0 0.0
        %538 = vmatprep.subr.mxu0 0.0
        %539 = vmatpush1.msra.mxu0 0.0
        %540 = vmatprep.subr.mxu0 0.0
        %541 = vmatpush1.msra.mxu0 0.0
        %542 = vmatprep.mubr.f32.mxu0 0.0
        %543 = vmatmul.mubr.f32.gmra.mrb[0].mxu0 %v476
        %v544 = vpop.f32.mrb[0].mxu0
        %v545 = vadd.f32 0.0, %v544
        %v546 = vpop.f32.mrb[0].mxu0
        %547 = vdwg.mxu0
        %v548 = vadd.f32 %v474, %v545
        %v549 = vxor.u32 %v548, 2147483648
        %v550 = vmul.f32 %v549, 1.442695
        %v551 = vpow.pop %v550
        %v552 = vadd.f32 %v551, 1.0
        %v553 = vrcp.pop %v552
        %v554 = vmul.f32 1.0, %v553
        %v555 = vtanh.pop %v548
        %557 = vrot.lane.b32.xlu0 %v473, 32
        %v558 = vpop.permute.xlu0 %557
        %v560 = vmul.f32 %v554, %v558
        %562 = vrot.lane.b32.xlu0 %v555, 32
        %v563 = vpop.permute.xlu0 %562
        %v565 = vmul.f32 %v554, %v563
        %567 = vrot.lane.b32.xlu0 %v565, 32
        %v568 = vpop.permute.xlu0 %567
        %v570 = vadd.f32 %v560, %v568
        %v571 = vtanh.pop %v570
        %573 = vrot.lane.b32.xlu0 %v571, 32
        %v574 = vpop.permute.xlu0 %573
        %v576 = vmul.f32 %v554, %v574
        %578 = vrot.lane.b32.xlu0 %v576, 64
        %v579 = vpop.permute.xlu0 %578
        %581 = vst.msk [vmem:[#allocation4] sm:$0xff] %vm328, %v579
        %583 = vrot.lane.b32.xlu0 %v570, 96
        %v584 = vpop.permute.xlu0 %583
        %586 = vst.msk [vmem:[#allocation5] sm:$0xff] %vm328, %v584
        %587 = vst.msk [vmem:[#allocation2] sm:$0xff] %vm328, %v579
        %v588 = vld [vmem:[#allocation4] sm:$0xff]
        %v589 = vld [vmem:[#allocation5] sm:$0xff]
        %s590 = scalar_lea.vmem [#allocation3], 8
        %v591 = vld [vmem:[%s590] sm:$0xff]
        %v593 = vsel %vm328, %v588, 0
        %595 = vmatprep.subr.mxu0 0.0
        %596 = vmatpush1.msra.mxu0 %v468
        %597 = vmatprep.subr.mxu0 0.0
        %598 = vmatpush1.msra.mxu0 %v469
        %599 = vmatprep.subr.mxu0 0.0
        %600 = vmatpush1.msra.mxu0 %v470
        %601 = vmatprep.subr.mxu0 0.0
        %602 = vmatpush1.msra.mxu0 %v471
        %603 = vmatprep.subr.mxu0 0.0
        %604 = vmatpush1.msra.mxu0 0.0
        %605 = vmatprep.subr.mxu0 0.0
        %606 = vmatpush1.msra.mxu0 0.0
        %607 = vmatprep.subr.mxu0 0.0
        %608 = vmatpush1.msra.mxu0 0.0
        %609 = vmatprep.subr.mxu0 0.0
        %610 = vmatpush1.msra.mxu0 0.0
        %611 = vmatprep.subr.mxu0 0.0
        %612 = vmatpush1.msra.mxu0 0.0
        %613 = vmatprep.subr.mxu0 0.0
        %614 = vmatpush1.msra.mxu0 0.0
        %615 = vmatprep.subr.mxu0 0.0
        %616 = vmatpush1.msra.mxu0 0.0
        %617 = vmatprep.subr.mxu0 0.0
        %618 = vmatpush1.msra.mxu0 0.0
        %619 = vmatprep.subr.mxu0 0.0
        %620 = vmatpush1.msra.mxu0 0.0
        %621 = vmatprep.subr.mxu0 0.0
        %622 = vmatpush1.msra.mxu0 0.0
        %623 = vmatprep.subr.mxu0 0.0
        %624 = vmatpush1.msra.mxu0 0.0
        %625 = vmatprep.subr.mxu0 0.0
        %626 = vmatpush1.msra.mxu0 0.0
        %627 = vmatprep.subr.mxu0 0.0
        %628 = vmatpush1.msra.mxu0 0.0
        %629 = vmatprep.subr.mxu0 0.0
        %630 = vmatpush1.msra.mxu0 0.0
        %631 = vmatprep.subr.mxu0 0.0
        %632 = vmatpush1.msra.mxu0 0.0
        %633 = vmatprep.subr.mxu0 0.0
        %634 = vmatpush1.msra.mxu0 0.0
        %635 = vmatprep.subr.mxu0 0.0
        %636 = vmatpush1.msra.mxu0 0.0
        %637 = vmatprep.subr.mxu0 0.0
        %638 = vmatpush1.msra.mxu0 0.0
        %639 = vmatprep.subr.mxu0 0.0
        %640 = vmatpush1.msra.mxu0 0.0
        %641 = vmatprep.subr.mxu0 0.0
        %642 = vmatpush1.msra.mxu0 0.0
        %643 = vmatprep.subr.mxu0 0.0
        %644 = vmatpush1.msra.mxu0 0.0
        %645 = vmatprep.subr.mxu0 0.0
        %646 = vmatpush1.msra.mxu0 0.0
        %647 = vmatprep.subr.mxu0 0.0
        %648 = vmatpush1.msra.mxu0 0.0
        %649 = vmatprep.subr.mxu0 0.0
        %650 = vmatpush1.msra.mxu0 0.0
        %651 = vmatprep.subr.mxu0 0.0
        %652 = vmatpush1.msra.mxu0 0.0
        %653 = vmatprep.subr.mxu0 0.0
        %654 = vmatpush1.msra.mxu0 0.0
        %655 = vmatprep.subr.mxu0 0.0
        %656 = vmatpush1.msra.mxu0 0.0
        %657 = vmatprep.subr.mxu0 0.0
        %658 = vmatpush1.msra.mxu0 0.0
        %659 = vmatprep.mubr.f32.mxu0 0.0
        %660 = vmatmul.mubr.f32.gmra.mrb[0].mxu0 %v593
        %v661 = vpop.f32.mrb[0].mxu0
        %v662 = vadd.f32 0.0, %v661
        %v663 = vpop.f32.mrb[0].mxu0
        %664 = vdwg.mxu0
        %v665 = vadd.f32 %v591, %v662
        %v666 = vxor.u32 %v665, 2147483648
        %v667 = vmul.f32 %v666, 1.442695
        %v668 = vpow.pop %v667
        %v669 = vadd.f32 %v668, 1.0
        %v670 = vrcp.pop %v669
        %v671 = vmul.f32 1.0, %v670
        %v672 = vtanh.pop %v665
        %674 = vrot.lane.b32.xlu0 %v589, 32
        %v675 = vpop.permute.xlu0 %674
        %v677 = vmul.f32 %v671, %v675
        %679 = vrot.lane.b32.xlu0 %v672, 32
        %v680 = vpop.permute.xlu0 %679
        %v682 = vmul.f32 %v671, %v680
        %684 = vrot.lane.b32.xlu0 %v682, 32
        %v685 = vpop.permute.xlu0 %684
        %v687 = vadd.f32 %v677, %v685
        %v688 = vtanh.pop %v687
        %690 = vrot.lane.b32.xlu0 %v688, 32
        %v691 = vpop.permute.xlu0 %690
        %v693 = vmul.f32 %v671, %v691
        %695 = vrot.lane.b32.xlu0 %v693, 64
        %v696 = vpop.permute.xlu0 %695
        %698 = vst.msk [vmem:[#allocation4] sm:$0xff] %vm328, %v696
        %700 = vrot.lane.b32.xlu0 %v687, 96
        %v701 = vpop.permute.xlu0 %700
        %703 = vst.msk [vmem:[#allocation5] sm:$0xff] %vm328, %v701
        %s704 = scalar_lea.vmem [#allocation2], 8
        %705 = vst.msk [vmem:[%s704] sm:$0xff] %vm328, %v696
        %v706 = vld [vmem:[#allocation4] sm:$0xff]
        %v707 = vld [vmem:[#allocation5] sm:$0xff]
        %s708 = scalar_lea.vmem [#allocation3], 16
        %v709 = vld [vmem:[%s708] sm:$0xff]
        %v711 = vsel %vm328, %v706, 0
        %713 = vmatprep.subr.mxu0 0.0
        %714 = vmatpush1.msra.mxu0 %v468
        %715 = vmatprep.subr.mxu0 0.0
        %716 = vmatpush1.msra.mxu0 %v469
        %717 = vmatprep.subr.mxu0 0.0
        %718 = vmatpush1.msra.mxu0 %v470
        %719 = vmatprep.subr.mxu0 0.0
        %720 = vmatpush1.msra.mxu0 %v471
        %721 = vmatprep.subr.mxu0 0.0
        %722 = vmatpush1.msra.mxu0 0.0
        %723 = vmatprep.subr.mxu0 0.0
        %724 = vmatpush1.msra.mxu0 0.0
        %725 = vmatprep.subr.mxu0 0.0
        %726 = vmatpush1.msra.mxu0 0.0
        %727 = vmatprep.subr.mxu0 0.0
        %728 = vmatpush1.msra.mxu0 0.0
        %729 = vmatprep.subr.mxu0 0.0
        %730 = vmatpush1.msra.mxu0 0.0
        %731 = vmatprep.subr.mxu0 0.0
        %732 = vmatpush1.msra.mxu0 0.0
        %733 = vmatprep.subr.mxu0 0.0
        %734 = vmatpush1.msra.mxu0 0.0
        %735 = vmatprep.subr.mxu0 0.0
        %736 = vmatpush1.msra.mxu0 0.0
        %737 = vmatprep.subr.mxu0 0.0
        %738 = vmatpush1.msra.mxu0 0.0
        %739 = vmatprep.subr.mxu0 0.0
        %740 = vmatpush1.msra.mxu0 0.0
        %741 = vmatprep.subr.mxu0 0.0
        %742 = vmatpush1.msra.mxu0 0.0
        %743 = vmatprep.subr.mxu0 0.0
        %744 = vmatpush1.msra.mxu0 0.0
        %745 = vmatprep.subr.mxu0 0.0
        %746 = vmatpush1.msra.mxu0 0.0
        %747 = vmatprep.subr.mxu0 0.0
        %748 = vmatpush1.msra.mxu0 0.0
        %749 = vmatprep.subr.mxu0 0.0
        %750 = vmatpush1.msra.mxu0 0.0
        %751 = vmatprep.subr.mxu0 0.0
        %752 = vmatpush1.msra.mxu0 0.0
        %753 = vmatprep.subr.mxu0 0.0
        %754 = vmatpush1.msra.mxu0 0.0
        %755 = vmatprep.subr.mxu0 0.0
        %756 = vmatpush1.msra.mxu0 0.0
        %757 = vmatprep.subr.mxu0 0.0
        %758 = vmatpush1.msra.mxu0 0.0
        %759 = vmatprep.subr.mxu0 0.0
        %760 = vmatpush1.msra.mxu0 0.0
        %761 = vmatprep.subr.mxu0 0.0
        %762 = vmatpush1.msra.mxu0 0.0
        %763 = vmatprep.subr.mxu0 0.0
        %764 = vmatpush1.msra.mxu0 0.0
        %765 = vmatprep.subr.mxu0 0.0
        %766 = vmatpush1.msra.mxu0 0.0
        %767 = vmatprep.subr.mxu0 0.0
        %768 = vmatpush1.msra.mxu0 0.0
        %769 = vmatprep.subr.mxu0 0.0
        %770 = vmatpush1.msra.mxu0 0.0
        %771 = vmatprep.subr.mxu0 0.0
        %772 = vmatpush1.msra.mxu0 0.0
        %773 = vmatprep.subr.mxu0 0.0
        %774 = vmatpush1.msra.mxu0 0.0
        %775 = vmatprep.subr.mxu0 0.0
        %776 = vmatpush1.msra.mxu0 0.0
        %777 = vmatprep.mubr.f32.mxu0 0.0
        %778 = vmatmul.mubr.f32.gmra.mrb[0].mxu0 %v711
        %v779 = vpop.f32.mrb[0].mxu0
        %v780 = vadd.f32 0.0, %v779
        %v781 = vpop.f32.mrb[0].mxu0
        %782 = vdwg.mxu0
        %v783 = vadd.f32 %v709, %v780
        %v784 = vxor.u32 %v783, 2147483648
        %v785 = vmul.f32 %v784, 1.442695
        %v786 = vpow.pop %v785
        %v787 = vadd.f32 %v786, 1.0
        %v788 = vrcp.pop %v787
        %v789 = vmul.f32 1.0, %v788
        %v790 = vtanh.pop %v783
        %792 = vrot.lane.b32.xlu0 %v707, 32
        %v793 = vpop.permute.xlu0 %792
        %v795 = vmul.f32 %v789, %v793
        %797 = vrot.lane.b32.xlu0 %v790, 32
        %v798 = vpop.permute.xlu0 %797
        %v800 = vmul.f32 %v789, %v798
        %802 = vrot.lane.b32.xlu0 %v800, 32
        %v803 = vpop.permute.xlu0 %802
        %v805 = vadd.f32 %v795, %v803
        %v806 = vtanh.pop %v805
        %808 = vrot.lane.b32.xlu0 %v806, 32
        %v809 = vpop.permute.xlu0 %808
        %v811 = vmul.f32 %v789, %v809
        %813 = vrot.lane.b32.xlu0 %v811, 64
        %v814 = vpop.permute.xlu0 %813
        %816 = vst.msk [vmem:[#allocation4] sm:$0xff] %vm328, %v814
        %818 = vrot.lane.b32.xlu0 %v805, 96
        %v819 = vpop.permute.xlu0 %818
        %821 = vst.msk [vmem:[#allocation5] sm:$0xff] %vm328, %v819
        %s822 = scalar_lea.vmem [#allocation2], 16
        %823 = vst.msk [vmem:[%s822] sm:$0xff] %vm328, %v814
        %v824 = vld [vmem:[#allocation4] sm:$0xff]
        %v825 = vld [vmem:[#allocation5] sm:$0xff]
        %s826 = scalar_lea.vmem [#allocation3], 24
        %v827 = vld [vmem:[%s826] sm:$0xff]
        %v829 = vsel %vm328, %v824, 0
        %831 = vmatprep.subr.mxu0 0.0
        %832 = vmatpush1.msra.mxu0 %v468
        %833 = vmatprep.subr.mxu0 0.0
        %834 = vmatpush1.msra.mxu0 %v469
        %835 = vmatprep.subr.mxu0 0.0
        %836 = vmatpush1.msra.mxu0 %v470
        %837 = vmatprep.subr.mxu0 0.0
        %838 = vmatpush1.msra.mxu0 %v471
        %839 = vmatprep.subr.mxu0 0.0
        %840 = vmatpush1.msra.mxu0 0.0
        %841 = vmatprep.subr.mxu0 0.0
        %842 = vmatpush1.msra.mxu0 0.0
        %843 = vmatprep.subr.mxu0 0.0
        %844 = vmatpush1.msra.mxu0 0.0
        %845 = vmatprep.subr.mxu0 0.0
        %846 = vmatpush1.msra.mxu0 0.0
        %847 = vmatprep.subr.mxu0 0.0
        %848 = vmatpush1.msra.mxu0 0.0
        %849 = vmatprep.subr.mxu0 0.0
        %850 = vmatpush1.msra.mxu0 0.0
        %851 = vmatprep.subr.mxu0 0.0
        %852 = vmatpush1.msra.mxu0 0.0
        %853 = vmatprep.subr.mxu0 0.0
        %854 = vmatpush1.msra.mxu0 0.0
        %855 = vmatprep.subr.mxu0 0.0
        %856 = vmatpush1.msra.mxu0 0.0
        %857 = vmatprep.subr.mxu0 0.0
        %858 = vmatpush1.msra.mxu0 0.0
        %859 = vmatprep.subr.mxu0 0.0
        %860 = vmatpush1.msra.mxu0 0.0
        %861 = vmatprep.subr.mxu0 0.0
        %862 = vmatpush1.msra.mxu0 0.0
        %863 = vmatprep.subr.mxu0 0.0
        %864 = vmatpush1.msra.mxu0 0.0
        %865 = vmatprep.subr.mxu0 0.0
        %866 = vmatpush1.msra.mxu0 0.0
        %867 = vmatprep.subr.mxu0 0.0
        %868 = vmatpush1.msra.mxu0 0.0
        %869 = vmatprep.subr.mxu0 0.0
        %870 = vmatpush1.msra.mxu0 0.0
        %871 = vmatprep.subr.mxu0 0.0
        %872 = vmatpush1.msra.mxu0 0.0
        %873 = vmatprep.subr.mxu0 0.0
        %874 = vmatpush1.msra.mxu0 0.0
        %875 = vmatprep.subr.mxu0 0.0
        %876 = vmatpush1.msra.mxu0 0.0
        %877 = vmatprep.subr.mxu0 0.0
        %878 = vmatpush1.msra.mxu0 0.0
        %879 = vmatprep.subr.mxu0 0.0
        %880 = vmatpush1.msra.mxu0 0.0
        %881 = vmatprep.subr.mxu0 0.0
        %882 = vmatpush1.msra.mxu0 0.0
        %883 = vmatprep.subr.mxu0 0.0
        %884 = vmatpush1.msra.mxu0 0.0
        %885 = vmatprep.subr.mxu0 0.0
        %886 = vmatpush1.msra.mxu0 0.0
        %887 = vmatprep.subr.mxu0 0.0
        %888 = vmatpush1.msra.mxu0 0.0
        %889 = vmatprep.subr.mxu0 0.0
        %890 = vmatpush1.msra.mxu0 0.0
        %891 = vmatprep.subr.mxu0 0.0
        %892 = vmatpush1.msra.mxu0 0.0
        %893 = vmatprep.subr.mxu0 0.0
        %894 = vmatpush1.msra.mxu0 0.0
        %895 = vmatprep.mubr.f32.mxu0 0.0
        %896 = vmatmul.mubr.f32.gmra.mrb[0].mxu0 %v829
        %v897 = vpop.f32.mrb[0].mxu0
        %v898 = vadd.f32 0.0, %v897
        %v899 = vpop.f32.mrb[0].mxu0
        %900 = vdwg.mxu0
        %v901 = vadd.f32 %v827, %v898
        %v902 = vxor.u32 %v901, 2147483648
        %v903 = vmul.f32 %v902, 1.442695
        %v904 = vpow.pop %v903
        %v905 = vadd.f32 %v904, 1.0
        %v906 = vrcp.pop %v905
        %v907 = vmul.f32 1.0, %v906
        %v908 = vtanh.pop %v901
        %910 = vrot.lane.b32.xlu0 %v825, 32
        %v911 = vpop.permute.xlu0 %910
        %v913 = vmul.f32 %v907, %v911
        %915 = vrot.lane.b32.xlu0 %v908, 32
        %v916 = vpop.permute.xlu0 %915
        %v918 = vmul.f32 %v907, %v916
        %920 = vrot.lane.b32.xlu0 %v918, 32
        %v921 = vpop.permute.xlu0 %920
        %v923 = vadd.f32 %v913, %v921
        %v924 = vtanh.pop %v923
        %926 = vrot.lane.b32.xlu0 %v924, 32
        %v927 = vpop.permute.xlu0 %926
        %v929 = vmul.f32 %v907, %v927
        %931 = vrot.lane.b32.xlu0 %v929, 64
        %v932 = vpop.permute.xlu0 %931
        %934 = vst.msk [vmem:[#allocation4] sm:$0xff] %vm328, %v932
        %936 = vrot.lane.b32.xlu0 %v923, 96
        %v937 = vpop.permute.xlu0 %936
        %939 = vst.msk [vmem:[#allocation5] sm:$0xff] %vm328, %v937
        %s940 = scalar_lea.vmem [#allocation2], 24
        %941 = vst.msk [vmem:[%s940] sm:$0xff] %vm328, %v932
        %v942 = vld [vmem:[#allocation4] sm:$0xff]
        %v943 = vld [vmem:[#allocation5] sm:$0xff]
        %s944 = scalar_lea.vmem [#allocation3], 32
        %v945 = vld [vmem:[%s944] sm:$0xff]
        %v947 = vsel %vm328, %v942, 0
        %949 = vmatprep.subr.mxu0 0.0
        %950 = vmatpush1.msra.mxu0 %v468
        %951 = vmatprep.subr.mxu0 0.0
        %952 = vmatpush1.msra.mxu0 %v469
        %953 = vmatprep.subr.mxu0 0.0
        %954 = vmatpush1.msra.mxu0 %v470
        %955 = vmatprep.subr.mxu0 0.0
        %956 = vmatpush1.msra.mxu0 %v471
        %957 = vmatprep.subr.mxu0 0.0
        %958 = vmatpush1.msra.mxu0 0.0
        %959 = vmatprep.subr.mxu0 0.0
        %960 = vmatpush1.msra.mxu0 0.0
        %961 = vmatprep.subr.mxu0 0.0
        %962 = vmatpush1.msra.mxu0 0.0
        %963 = vmatprep.subr.mxu0 0.0
        %964 = vmatpush1.msra.mxu0 0.0
        %965 = vmatprep.subr.mxu0 0.0
        %966 = vmatpush1.msra.mxu0 0.0
        %967 = vmatprep.subr.mxu0 0.0
        %968 = vmatpush1.msra.mxu0 0.0
        %969 = vmatprep.subr.mxu0 0.0
        %970 = vmatpush1.msra.mxu0 0.0
        %971 = vmatprep.subr.mxu0 0.0
        %972 = vmatpush1.msra.mxu0 0.0
        %973 = vmatprep.subr.mxu0 0.0
        %974 = vmatpush1.msra.mxu0 0.0
        %975 = vmatprep.subr.mxu0 0.0
        %976 = vmatpush1.msra.mxu0 0.0
        %977 = vmatprep.subr.mxu0 0.0
        %978 = vmatpush1.msra.mxu0 0.0
        %979 = vmatprep.subr.mxu0 0.0
        %980 = vmatpush1.msra.mxu0 0.0
        %981 = vmatprep.subr.mxu0 0.0
        %982 = vmatpush1.msra.mxu0 0.0
        %983 = vmatprep.subr.mxu0 0.0
        %984 = vmatpush1.msra.mxu0 0.0
        %985 = vmatprep.subr.mxu0 0.0
        %986 = vmatpush1.msra.mxu0 0.0
        %987 = vmatprep.subr.mxu0 0.0
        %988 = vmatpush1.msra.mxu0 0.0
        %989 = vmatprep.subr.mxu0 0.0
        %990 = vmatpush1.msra.mxu0 0.0
        %991 = vmatprep.subr.mxu0 0.0
        %992 = vmatpush1.msra.mxu0 0.0
        %993 = vmatprep.subr.mxu0 0.0
        %994 = vmatpush1.msra.mxu0 0.0
        %995 = vmatprep.subr.mxu0 0.0
        %996 = vmatpush1.msra.mxu0 0.0
        %997 = vmatprep.subr.mxu0 0.0
        %998 = vmatpush1.msra.mxu0 0.0
        %999 = vmatprep.subr.mxu0 0.0
        %1000 = vmatpush1.msra.mxu0 0.0
        %1001 = vmatprep.subr.mxu0 0.0
        %1002 = vmatpush1.msra.mxu0 0.0
        %1003 = vmatprep.subr.mxu0 0.0
        %1004 = vmatpush1.msra.mxu0 0.0
        %1005 = vmatprep.subr.mxu0 0.0
        %1006 = vmatpush1.msra.mxu0 0.0
        %1007 = vmatprep.subr.mxu0 0.0
        %1008 = vmatpush1.msra.mxu0 0.0
        %1009 = vmatprep.subr.mxu0 0.0
        %1010 = vmatpush1.msra.mxu0 0.0
        %1011 = vmatprep.subr.mxu0 0.0
        %1012 = vmatpush1.msra.mxu0 0.0
        %1013 = vmatprep.mubr.f32.mxu0 0.0
        %1014 = vmatmul.mubr.f32.gmra.mrb[0].mxu0 %v947
        %v1015 = vpop.f32.mrb[0].mxu0
        %v1016 = vadd.f32 0.0, %v1015
        %v1017 = vpop.f32.mrb[0].mxu0
        %1018 = vdwg.mxu0
        %v1019 = vadd.f32 %v945, %v1016
        %v1020 = vxor.u32 %v1019, 2147483648
        %v1021 = vmul.f32 %v1020, 1.442695
        %v1022 = vpow.pop %v1021
        %v1023 = vadd.f32 %v1022, 1.0
        %v1024 = vrcp.pop %v1023
        %v1025 = vmul.f32 1.0, %v1024
        %v1026 = vtanh.pop %v1019
        %1028 = vrot.lane.b32.xlu0 %v943, 32
        %v1029 = vpop.permute.xlu0 %1028
        %v1031 = vmul.f32 %v1025, %v1029
        %1033 = vrot.lane.b32.xlu0 %v1026, 32
        %v1034 = vpop.permute.xlu0 %1033
        %v1036 = vmul.f32 %v1025, %v1034
        %1038 = vrot.lane.b32.xlu0 %v1036, 32
        %v1039 = vpop.permute.xlu0 %1038
        %v1041 = vadd.f32 %v1031, %v1039
        %v1042 = vtanh.pop %v1041
        %1044 = vrot.lane.b32.xlu0 %v1042, 32
        %v1045 = vpop.permute.xlu0 %1044
        %v1047 = vmul.f32 %v1025, %v1045
        %1049 = vrot.lane.b32.xlu0 %v1047, 64
        %v1050 = vpop.permute.xlu0 %1049
        %1052 = vst.msk [vmem:[#allocation4] sm:$0xff] %vm328, %v1050
        %1054 = vrot.lane.b32.xlu0 %v1041, 96
        %v1055 = vpop.permute.xlu0 %1054
        %1057 = vst.msk [vmem:[#allocation5] sm:$0xff] %vm328, %v1055
        %s1058 = scalar_lea.vmem [#allocation2], 32
        %1059 = vst.msk [vmem:[%s1058] sm:$0xff] %vm328, %v1050
        %v1060 = vld [vmem:[#allocation4] sm:$0xff]
        %v1061 = vld [vmem:[#allocation5] sm:$0xff]
        %s1062 = scalar_lea.vmem [#allocation3], 40
        %v1063 = vld [vmem:[%s1062] sm:$0xff]
        %v1065 = vsel %vm328, %v1060, 0
        %1067 = vmatprep.subr.mxu0 0.0
        %1068 = vmatpush1.msra.mxu0 %v468
        %1069 = vmatprep.subr.mxu0 0.0
        %1070 = vmatpush1.msra.mxu0 %v469
        %1071 = vmatprep.subr.mxu0 0.0
        %1072 = vmatpush1.msra.mxu0 %v470
        %1073 = vmatprep.subr.mxu0 0.0
        %1074 = vmatpush1.msra.mxu0 %v471
        %1075 = vmatprep.subr.mxu0 0.0
        %1076 = vmatpush1.msra.mxu0 0.0
        %1077 = vmatprep.subr.mxu0 0.0
        %1078 = vmatpush1.msra.mxu0 0.0
        %1079 = vmatprep.subr.mxu0 0.0
        %1080 = vmatpush1.msra.mxu0 0.0
        %1081 = vmatprep.subr.mxu0 0.0
        %1082 = vmatpush1.msra.mxu0 0.0
        %1083 = vmatprep.subr.mxu0 0.0
        %1084 = vmatpush1.msra.mxu0 0.0
        %1085 = vmatprep.subr.mxu0 0.0
        %1086 = vmatpush1.msra.mxu0 0.0
        %1087 = vmatprep.subr.mxu0 0.0
        %1088 = vmatpush1.msra.mxu0 0.0
        %1089 = vmatprep.subr.mxu0 0.0
        %1090 = vmatpush1.msra.mxu0 0.0
        %1091 = vmatprep.subr.mxu0 0.0
        %1092 = vmatpush1.msra.mxu0 0.0
        %1093 = vmatprep.subr.mxu0 0.0
        %1094 = vmatpush1.msra.mxu0 0.0
        %1095 = vmatprep.subr.mxu0 0.0
        %1096 = vmatpush1.msra.mxu0 0.0
        %1097 = vmatprep.subr.mxu0 0.0
        %1098 = vmatpush1.msra.mxu0 0.0
        %1099 = vmatprep.subr.mxu0 0.0
        %1100 = vmatpush1.msra.mxu0 0.0
        %1101 = vmatprep.subr.mxu0 0.0
        %1102 = vmatpush1.msra.mxu0 0.0
        %1103 = vmatprep.subr.mxu0 0.0
        %1104 = vmatpush1.msra.mxu0 0.0
        %1105 = vmatprep.subr.mxu0 0.0
        %1106 = vmatpush1.msra.mxu0 0.0
        %1107 = vmatprep.subr.mxu0 0.0
        %1108 = vmatpush1.msra.mxu0 0.0
        %1109 = vmatprep.subr.mxu0 0.0
        %1110 = vmatpush1.msra.mxu0 0.0
        %1111 = vmatprep.subr.mxu0 0.0
        %1112 = vmatpush1.msra.mxu0 0.0
        %1113 = vmatprep.subr.mxu0 0.0
        %1114 = vmatpush1.msra.mxu0 0.0
        %1115 = vmatprep.subr.mxu0 0.0
        %1116 = vmatpush1.msra.mxu0 0.0
        %1117 = vmatprep.subr.mxu0 0.0
        %1118 = vmatpush1.msra.mxu0 0.0
        %1119 = vmatprep.subr.mxu0 0.0
        %1120 = vmatpush1.msra.mxu0 0.0
        %1121 = vmatprep.subr.mxu0 0.0
        %1122 = vmatpush1.msra.mxu0 0.0
        %1123 = vmatprep.subr.mxu0 0.0
        %1124 = vmatpush1.msra.mxu0 0.0
        %1125 = vmatprep.subr.mxu0 0.0
        %1126 = vmatpush1.msra.mxu0 0.0
        %1127 = vmatprep.subr.mxu0 0.0
        %1128 = vmatpush1.msra.mxu0 0.0
        %1129 = vmatprep.subr.mxu0 0.0
        %1130 = vmatpush1.msra.mxu0 0.0
        %1131 = vmatprep.mubr.f32.mxu0 0.0
        %1132 = vmatmul.mubr.f32.gmra.mrb[0].mxu0 %v1065
        %v1133 = vpop.f32.mrb[0].mxu0
        %v1134 = vadd.f32 0.0, %v1133
        %v1135 = vpop.f32.mrb[0].mxu0
        %1136 = vdwg.mxu0
        %v1137 = vadd.f32 %v1063, %v1134
        %v1138 = vxor.u32 %v1137, 2147483648
        %v1139 = vmul.f32 %v1138, 1.442695
        %v1140 = vpow.pop %v1139
        %v1141 = vadd.f32 %v1140, 1.0
        %v1142 = vrcp.pop %v1141
        %v1143 = vmul.f32 1.0, %v1142
        %v1144 = vtanh.pop %v1137
        %1146 = vrot.lane.b32.xlu0 %v1061, 32
        %v1147 = vpop.permute.xlu0 %1146
        %v1149 = vmul.f32 %v1143, %v1147
        %1151 = vrot.lane.b32.xlu0 %v1144, 32
        %v1152 = vpop.permute.xlu0 %1151
        %v1154 = vmul.f32 %v1143, %v1152
        %1156 = vrot.lane.b32.xlu0 %v1154, 32
        %v1157 = vpop.permute.xlu0 %1156
        %v1159 = vadd.f32 %v1149, %v1157
        %v1160 = vtanh.pop %v1159
        %1162 = vrot.lane.b32.xlu0 %v1160, 32
        %v1163 = vpop.permute.xlu0 %1162
        %v1165 = vmul.f32 %v1143, %v1163
        %1167 = vrot.lane.b32.xlu0 %v1165, 64
        %v1168 = vpop.permute.xlu0 %1167
        %1170 = vst.msk [vmem:[#allocation4] sm:$0xff] %vm328, %v1168
        %1172 = vrot.lane.b32.xlu0 %v1159, 96
        %v1173 = vpop.permute.xlu0 %1172
        %1175 = vst.msk [vmem:[#allocation5] sm:$0xff] %vm328, %v1173
        %s1176 = scalar_lea.vmem [#allocation2], 40
        %1177 = vst.msk [vmem:[%s1176] sm:$0xff] %vm328, %v1168
        %v1178 = vld [vmem:[#allocation4] sm:$0xff]
        %v1179 = vld [vmem:[#allocation5] sm:$0xff]
        %s1180 = scalar_lea.vmem [#allocation3], 48
        %v1181 = vld [vmem:[%s1180] sm:$0xff]
        %v1183 = vsel %vm328, %v1178, 0
        %1185 = vmatprep.subr.mxu0 0.0
        %1186 = vmatpush1.msra.mxu0 %v468
        %1187 = vmatprep.subr.mxu0 0.0
        %1188 = vmatpush1.msra.mxu0 %v469
        %1189 = vmatprep.subr.mxu0 0.0
        %1190 = vmatpush1.msra.mxu0 %v470
        %1191 = vmatprep.subr.mxu0 0.0
        %1192 = vmatpush1.msra.mxu0 %v471
        %1193 = vmatprep.subr.mxu0 0.0
        %1194 = vmatpush1.msra.mxu0 0.0
        %1195 = vmatprep.subr.mxu0 0.0
        %1196 = vmatpush1.msra.mxu0 0.0
        %1197 = vmatprep.subr.mxu0 0.0
        %1198 = vmatpush1.msra.mxu0 0.0
        %1199 = vmatprep.subr.mxu0 0.0
        %1200 = vmatpush1.msra.mxu0 0.0
        %1201 = vmatprep.subr.mxu0 0.0
        %1202 = vmatpush1.msra.mxu0 0.0
        %1203 = vmatprep.subr.mxu0 0.0
        %1204 = vmatpush1.msra.mxu0 0.0
        %1205 = vmatprep.subr.mxu0 0.0
        %1206 = vmatpush1.msra.mxu0 0.0
        %1207 = vmatprep.subr.mxu0 0.0
        %1208 = vmatpush1.msra.mxu0 0.0
        %1209 = vmatprep.subr.mxu0 0.0
        %1210 = vmatpush1.msra.mxu0 0.0
        %1211 = vmatprep.subr.mxu0 0.0
        %1212 = vmatpush1.msra.mxu0 0.0
        %1213 = vmatprep.subr.mxu0 0.0
        %1214 = vmatpush1.msra.mxu0 0.0
        %1215 = vmatprep.subr.mxu0 0.0
        %1216 = vmatpush1.msra.mxu0 0.0
        %1217 = vmatprep.subr.mxu0 0.0
        %1218 = vmatpush1.msra.mxu0 0.0
        %1219 = vmatprep.subr.mxu0 0.0
        %1220 = vmatpush1.msra.mxu0 0.0
        %1221 = vmatprep.subr.mxu0 0.0
        %1222 = vmatpush1.msra.mxu0 0.0
        %1223 = vmatprep.subr.mxu0 0.0
        %1224 = vmatpush1.msra.mxu0 0.0
        %1225 = vmatprep.subr.mxu0 0.0
        %1226 = vmatpush1.msra.mxu0 0.0
        %1227 = vmatprep.subr.mxu0 0.0
        %1228 = vmatpush1.msra.mxu0 0.0
        %1229 = vmatprep.subr.mxu0 0.0
        %1230 = vmatpush1.msra.mxu0 0.0
        %1231 = vmatprep.subr.mxu0 0.0
        %1232 = vmatpush1.msra.mxu0 0.0
        %1233 = vmatprep.subr.mxu0 0.0
        %1234 = vmatpush1.msra.mxu0 0.0
        %1235 = vmatprep.subr.mxu0 0.0
        %1236 = vmatpush1.msra.mxu0 0.0
        %1237 = vmatprep.subr.mxu0 0.0
        %1238 = vmatpush1.msra.mxu0 0.0
        %1239 = vmatprep.subr.mxu0 0.0
        %1240 = vmatpush1.msra.mxu0 0.0
        %1241 = vmatprep.subr.mxu0 0.0
        %1242 = vmatpush1.msra.mxu0 0.0
        %1243 = vmatprep.subr.mxu0 0.0
        %1244 = vmatpush1.msra.mxu0 0.0
        %1245 = vmatprep.subr.mxu0 0.0
        %1246 = vmatpush1.msra.mxu0 0.0
        %1247 = vmatprep.subr.mxu0 0.0
        %1248 = vmatpush1.msra.mxu0 0.0
        %1249 = vmatprep.mubr.f32.mxu0 0.0
        %1250 = vmatmul.mubr.f32.gmra.mrb[0].mxu0 %v1183
        %v1251 = vpop.f32.mrb[0].mxu0
        %v1252 = vadd.f32 0.0, %v1251
        %v1253 = vpop.f32.mrb[0].mxu0
        %1254 = vdwg.mxu0
        %v1255 = vadd.f32 %v1181, %v1252
        %v1256 = vxor.u32 %v1255, 2147483648
        %v1257 = vmul.f32 %v1256, 1.442695
        %v1258 = vpow.pop %v1257
        %v1259 = vadd.f32 %v1258, 1.0
        %v1260 = vrcp.pop %v1259
        %v1261 = vmul.f32 1.0, %v1260
        %v1262 = vtanh.pop %v1255
        %1264 = vrot.lane.b32.xlu0 %v1179, 32
        %v1265 = vpop.permute.xlu0 %1264
        %v1267 = vmul.f32 %v1261, %v1265
        %1269 = vrot.lane.b32.xlu0 %v1262, 32
        %v1270 = vpop.permute.xlu0 %1269
        %v1272 = vmul.f32 %v1261, %v1270
        %1274 = vrot.lane.b32.xlu0 %v1272, 32
        %v1275 = vpop.permute.xlu0 %1274
        %v1277 = vadd.f32 %v1267, %v1275
        %v1278 = vtanh.pop %v1277
        %1280 = vrot.lane.b32.xlu0 %v1278, 32
        %v1281 = vpop.permute.xlu0 %1280
        %v1283 = vmul.f32 %v1261, %v1281
        %1285 = vrot.lane.b32.xlu0 %v1283, 64
        %v1286 = vpop.permute.xlu0 %1285
        %1288 = vst.msk [vmem:[#allocation4] sm:$0xff] %vm328, %v1286
        %1290 = vrot.lane.b32.xlu0 %v1277, 96
        %v1291 = vpop.permute.xlu0 %1290
        %1293 = vst.msk [vmem:[#allocation5] sm:$0xff] %vm328, %v1291
        %s1294 = scalar_lea.vmem [#allocation2], 48
        %1295 = vst.msk [vmem:[%s1294] sm:$0xff] %vm328, %v1286
        %v1296 = vld [vmem:[#allocation4] sm:$0xff]
        %v1297 = vld [vmem:[#allocation5] sm:$0xff]
        %s1298 = scalar_lea.vmem [#allocation3], 56
        %v1299 = vld [vmem:[%s1298] sm:$0xff]
        %v1301 = vsel %vm328, %v1296, 0
        %1303 = vmatprep.subr.mxu0 0.0
        %1304 = vmatpush1.msra.mxu0 %v468
        %1305 = vmatprep.subr.mxu0 0.0
        %1306 = vmatpush1.msra.mxu0 %v469
        %1307 = vmatprep.subr.mxu0 0.0
        %1308 = vmatpush1.msra.mxu0 %v470
        %1309 = vmatprep.subr.mxu0 0.0
        %1310 = vmatpush1.msra.mxu0 %v471
        %1311 = vmatprep.subr.mxu0 0.0
        %1312 = vmatpush1.msra.mxu0 0.0
        %1313 = vmatprep.subr.mxu0 0.0
        %1314 = vmatpush1.msra.mxu0 0.0
        %1315 = vmatprep.subr.mxu0 0.0
        %1316 = vmatpush1.msra.mxu0 0.0
        %1317 = vmatprep.subr.mxu0 0.0
        %1318 = vmatpush1.msra.mxu0 0.0
        %1319 = vmatprep.subr.mxu0 0.0
        %1320 = vmatpush1.msra.mxu0 0.0
        %1321 = vmatprep.subr.mxu0 0.0
        %1322 = vmatpush1.msra.mxu0 0.0
        %1323 = vmatprep.subr.mxu0 0.0
        %1324 = vmatpush1.msra.mxu0 0.0
        %1325 = vmatprep.subr.mxu0 0.0
        %1326 = vmatpush1.msra.mxu0 0.0
        %1327 = vmatprep.subr.mxu0 0.0
        %1328 = vmatpush1.msra.mxu0 0.0
        %1329 = vmatprep.subr.mxu0 0.0
        %1330 = vmatpush1.msra.mxu0 0.0
        %1331 = vmatprep.subr.mxu0 0.0
        %1332 = vmatpush1.msra.mxu0 0.0
        %1333 = vmatprep.subr.mxu0 0.0
        %1334 = vmatpush1.msra.mxu0 0.0
        %1335 = vmatprep.subr.mxu0 0.0
        %1336 = vmatpush1.msra.mxu0 0.0
        %1337 = vmatprep.subr.mxu0 0.0
        %1338 = vmatpush1.msra.mxu0 0.0
        %1339 = vmatprep.subr.mxu0 0.0
        %1340 = vmatpush1.msra.mxu0 0.0
        %1341 = vmatprep.subr.mxu0 0.0
        %1342 = vmatpush1.msra.mxu0 0.0
        %1343 = vmatprep.subr.mxu0 0.0
        %1344 = vmatpush1.msra.mxu0 0.0
        %1345 = vmatprep.subr.mxu0 0.0
        %1346 = vmatpush1.msra.mxu0 0.0
        %1347 = vmatprep.subr.mxu0 0.0
        %1348 = vmatpush1.msra.mxu0 0.0
        %1349 = vmatprep.subr.mxu0 0.0
        %1350 = vmatpush1.msra.mxu0 0.0
        %1351 = vmatprep.subr.mxu0 0.0
        %1352 = vmatpush1.msra.mxu0 0.0
        %1353 = vmatprep.subr.mxu0 0.0
        %1354 = vmatpush1.msra.mxu0 0.0
        %1355 = vmatprep.subr.mxu0 0.0
        %1356 = vmatpush1.msra.mxu0 0.0
        %1357 = vmatprep.subr.mxu0 0.0
        %1358 = vmatpush1.msra.mxu0 0.0
        %1359 = vmatprep.subr.mxu0 0.0
        %1360 = vmatpush1.msra.mxu0 0.0
        %1361 = vmatprep.subr.mxu0 0.0
        %1362 = vmatpush1.msra.mxu0 0.0
        %1363 = vmatprep.subr.mxu0 0.0
        %1364 = vmatpush1.msra.mxu0 0.0
        %1365 = vmatprep.subr.mxu0 0.0
        %1366 = vmatpush1.msra.mxu0 0.0
        %1367 = vmatprep.mubr.f32.mxu0 0.0
        %1368 = vmatmul.mubr.f32.gmra.mrb[0].mxu0 %v1301
        %v1369 = vpop.f32.mrb[0].mxu0
        %v1370 = vadd.f32 0.0, %v1369
        %v1371 = vpop.f32.mrb[0].mxu0
        %1372 = vdwg.mxu0
        %v1373 = vadd.f32 %v1299, %v1370
        %v1374 = vxor.u32 %v1373, 2147483648
        %v1375 = vmul.f32 %v1374, 1.442695
        %v1376 = vpow.pop %v1375
        %v1377 = vadd.f32 %v1376, 1.0
        %v1378 = vrcp.pop %v1377
        %v1379 = vmul.f32 1.0, %v1378
        %v1380 = vtanh.pop %v1373
        %1382 = vrot.lane.b32.xlu0 %v1297, 32
        %v1383 = vpop.permute.xlu0 %1382
        %v1385 = vmul.f32 %v1379, %v1383
        %1387 = vrot.lane.b32.xlu0 %v1380, 32
        %v1388 = vpop.permute.xlu0 %1387
        %v1390 = vmul.f32 %v1379, %v1388
        %1392 = vrot.lane.b32.xlu0 %v1390, 32
        %v1393 = vpop.permute.xlu0 %1392
        %v1395 = vadd.f32 %v1385, %v1393
        %v1396 = vtanh.pop %v1395
        %1398 = vrot.lane.b32.xlu0 %v1396, 32
        %v1399 = vpop.permute.xlu0 %1398
        %v1401 = vmul.f32 %v1379, %v1399
        %1403 = vrot.lane.b32.xlu0 %v1401, 64
        %v1404 = vpop.permute.xlu0 %1403
        %1406 = vst.msk [vmem:[#allocation4] sm:$0xff] %vm328, %v1404
        %1408 = vrot.lane.b32.xlu0 %v1395, 96
        %v1409 = vpop.permute.xlu0 %1408
        %1411 = vst.msk [vmem:[#allocation5] sm:$0xff] %vm328, %v1409
        %s1412 = scalar_lea.vmem [#allocation2], 56
        %1413 = vst.msk [vmem:[%s1412] sm:$0xff] %vm328, %v1404
        %v1414 = vld [vmem:[#allocation4] sm:$0xff]
        %1415 = vst.msk [vmem:[%s272] sm:$0xff] %vm328, %v1414
        %v1416 = vld [vmem:[#allocation5] sm:$0xff]
        %1417 = vst.msk [vmem:[%s279] sm:$0xff] %vm328, %v1416
        %s1418 = sand.u32 %s133, 1
        %s1419 = scalar_lea.sflag [#allocation8], %s1418
        %s1420 = sand.u32 %s133, 1
        %s1421 = smul.addr %s1420, 8
        %s1422 = scalar_lea.vmem [#allocation9], %s1421
        %s1423 = sand.u32 %s159, 1
        %s1424 = scalar_lea.sflag [#allocation11], %s1423
        %s1425 = sand.u32 %s159, 1
        %s1426 = smul.addr %s1425, 8
        %s1427 = scalar_lea.vmem [#allocation10], %s1426
        // Predicated region
        $region45: #{tpu_custom_call.1} parent=35 // pred_check
          %p1428 = pneg %p143
        $region46: #{tpu_custom_call.1} parent=35 // pred_check_branch
          %1430 = sbr.rel (%p1428) target = $region48
        $region47: #{tpu_custom_call.1} parent=35 // pred_region
          %s1432 = ssub.s32 128, 128
          %1433 = vsyncadd %s1419, %s1432
          %s1434 = smul.addr %s26, 128
          %s1435 = scalar_lea.hbm %s4, %s1434
          %s1437 = sshll.u32 %s1422, 4
          %s1438 = int_to_ptr.vmem [resolvable:$true] %s1437
          %1440 = dma.vmem_to_hbm [thread:$0]  %s1438, 128, %s1435, %s1419
        $region48: #{tpu_custom_call.1} parent=35 // pred_fallthru
          _
        // Predicated region
        $region49: #{tpu_custom_call.1} parent=35 // pred_check
          %p1441 = pneg %p169
        $region50: #{tpu_custom_call.1} parent=35 // pred_check_branch
          %1443 = sbr.rel (%p1441) target = $region52
        $region51: #{tpu_custom_call.1} parent=35 // pred_region
          %s1445 = ssub.s32 128, 128
          %1446 = vsyncadd %s1424, %s1445
          %s1447 = smul.addr %s26, 128
          %s1448 = scalar_lea.hbm %s5, %s1447
          %s1450 = sshll.u32 %s1427, 4
          %s1451 = int_to_ptr.vmem [resolvable:$true] %s1450
          %1453 = dma.vmem_to_hbm [thread:$0]  %s1451, 128, %s1448, %s1424
        $region52: #{tpu_custom_call.1} parent=35 // pred_fallthru
          _
      $region36: #{tpu_custom_call.1} parent=5 // pred_fallthru
        _
      %p1454 = scmp.le.s32.totalorder 2, %s21
      // Predicated region
      $region53: #{tpu_custom_call.1} parent=5 // pred_check
        %p1455 = pneg %p1454
      $region54: #{tpu_custom_call.1} parent=5 // pred_check_branch
        %1457 = sbr.rel (%p1455) target = $region56
      $region55: #{tpu_custom_call.1} parent=5 // pred_region
        %s1458 = ssub.s32 %s21, 2
        // Predicated region
        $region57: #{tpu_custom_call.1} parent=55 // pred_check
          %p1459 = pneg %p149
        $region58: #{tpu_custom_call.1} parent=55 // pred_check_branch
          %1461 = sbr.rel (%p1459) target = $region60
        $region59: #{tpu_custom_call.1} parent=55 // pred_region
          %s1462 = sand.u32 %s134, 1
          %s1463 = scalar_lea.sflag [#allocation8], %s1462
          %s1464 = sand.u32 %s134, 1
          %s1465 = smul.addr %s1464, 8
          %s1466 = scalar_lea.vmem [#allocation9], %s1465
          %1467 = dma.done %s1463, 128
        $region60: #{tpu_custom_call.1} parent=55 // pred_fallthru
          _
        // Predicated region
        $region61: #{tpu_custom_call.1} parent=55 // pred_check
          %p1468 = pneg %p175
        $region62: #{tpu_custom_call.1} parent=55 // pred_check_branch
          %1470 = sbr.rel (%p1468) target = $region64
        $region63: #{tpu_custom_call.1} parent=55 // pred_region
          %s1471 = sand.u32 %s160, 1
          %s1472 = scalar_lea.sflag [#allocation11], %s1471
          %s1473 = sand.u32 %s160, 1
          %s1474 = smul.addr %s1473, 8
          %s1475 = scalar_lea.vmem [#allocation10], %s1474
          %1476 = dma.done %s1472, 128
        $region64: #{tpu_custom_call.1} parent=55 // pred_fallthru
          _
      $region56: #{tpu_custom_call.1} parent=5 // pred_fallthru
        _
    $region6: #{tpu_custom_call.1} parent=1 // loop_footer
      %s25 = sadd.s32 1, %s21
    $region7: #{tpu_custom_call.1} parent=1 // loop_footer_branch
      %20 = sbr.rel target = $region3
    $region8: #{tpu_custom_call.1} parent=1 // loop_exit
      _
    %1477 = vsyncpa [#allocation7], 1
    %s1478 = scalar_lea.sflag [#allocation7], 1
    %1479 = vsyncpa %s1478, 1
    %1480 = vsyncpa [#allocation8], 1
    %s1481 = scalar_lea.sflag [#allocation8], 1
    %1482 = vsyncpa %s1481, 1
    %1483 = vsyncpa [#allocation11], 1
    %s1484 = scalar_lea.sflag [#allocation11], 1
    %1485 = vsyncpa %s1484, 1

</llo_original>
